<compile_context>
chip_gen: v7x
topology: tpu7x:2x2x1
jax: 0.10.0
libtpu: 0.0.40
codegen_flags: <defaults>
</compile_context>

<pallas_src>
import jax
import jax.numpy as jnp
from jax.experimental import pallas as pl
from jax.experimental.pallas import tpu as pltpu


def _dds_self_attention_kernel(xpad_ref, wpw_ref, wdw_ref, wu_ref, bu_ref,
                               o_ref, ypad_ref, hout_ref):
    C, L = o_ref.shape[1], o_ref.shape[2]
    R, K = wdw_ref.shape                 # R = 3 * heads * C
    HC = R // 3
    heads = HC // C

    # Stacked Q/K/V pointwise 1x1 conv: ONE (3HC, C) x (C, L+K-1) MXU matmul.
    # The input is pre-padded with zeros along time and the conv has no bias,
    # so this already IS the "same"-padded pointwise activation.
    ypad_ref[...] = jnp.dot(wpw_ref[...], xpad_ref[0],
                            preferred_element_type=jnp.float32)

    # Folded gated depthwise "same" conv: K lane-shifted FMAs (VPU work on
    # unaligned VMEM sub-loads) -- no shift-matrix matmuls, no in-kernel pad.
    z = wdw_ref[:, 0:1] * ypad_ref[:, 0:L]
    for k in range(1, K):
        z = z + wdw_ref[:, k:k + 1] * ypad_ref[:, k:k + L]

    # 1/C**0.25 scale is already folded into the Q/K pointwise weights.
    q = z[0:HC]
    k_ = z[HC:2 * HC]
    v = z[2 * HC:]

    for h in range(heads):
        qh = q[h * C:(h + 1) * C, :]
        kh = k_[h * C:(h + 1) * C, :]
        vh = v[h * C:(h + 1) * C, :]
        # scores[i, j] = sum_c kh[c, i] * qh[c, j]   (== bmm(keys^T, queries))
        scores = jax.lax.dot_general(kh, qh, (((0,), (0,)), ((), ())),
                                     preferred_element_type=jnp.float32)  # (Lk, Lq)
        # softmax over the keys axis (dim=1 of the torch (b*h, l, l) tensor)
        scores = scores - jnp.max(scores, axis=0, keepdims=True)
        e = jnp.exp(scores)
        p = e * pl.reciprocal(jnp.sum(e, axis=0, keepdims=True), approx=True)
        hout_ref[h * C:(h + 1) * C, :] = jnp.dot(
            vh, p, preferred_element_type=jnp.float32)                    # (C, L)

    # Fused head unification: ONE (C, H*C) x (H*C, L) matmul + bias.
    o_ref[0] = (jnp.dot(wu_ref[...], hout_ref[...],
                        preferred_element_type=jnp.float32)
                + bu_ref[...]).astype(o_ref.dtype)


def ddsct_self_attention(x, params, heads):
    B, C, L = x.shape
    HC = heads * C
    scale = jnp.float32(1.0 / (C ** 0.25))

    # Stack Q/K/V; fold the attention scale into the Q/K pointwise weights.
    w_pw = jnp.concatenate([params["wq_pw"] * scale,
                            params["wk_pw"] * scale,
                            params["wv_pw"]], axis=0).astype(jnp.float32)   # (3HC, C)
    w_dw = jnp.concatenate([params["wq_dw"], params["wk_dw"],
                            params["wv_dw"]], axis=0).astype(jnp.float32)   # (3HC, K)
    if heads > 1:
        wu, bu = params["wu"], params["bu"]
    else:
        wu = jnp.eye(C, dtype=jnp.float32)            # unify_heads == Identity
        bu = jnp.zeros((C, 1), jnp.float32)

    K = w_dw.shape[1]
    P = (K - 1) // 2
    Lp = L + 2 * P
    # Zero-pad along time once on the host; the bias-free pointwise conv keeps
    # the pad columns at zero, so the kernel needs no pad/concat at all.
    xpad = jnp.pad(x, ((0, 0), (0, 0), (P, P)))

    def full_spec(a):
        nd = a.ndim
        return pl.BlockSpec(a.shape, lambda b, _nd=nd: (0,) * _nd)

    R = 3 * HC
    flops = B * (2 * R * C * Lp            # stacked pointwise conv
                 + 2 * R * K * L           # depthwise FMAs
                 + heads * 4 * C * L * L   # scores + values @ softmax
                 + 2 * C * HC * L)         # fused head unification
    bytes_accessed = 4 * (xpad.size + w_pw.size + w_dw.size + wu.size + bu.size
                          + B * C * L)
    cost = pl.CostEstimate(flops=int(flops),
                           transcendentals=int(B * heads * L * L),
                           bytes_accessed=int(bytes_accessed))

    return pl.pallas_call(
        _dds_self_attention_kernel,
        out_shape=jax.ShapeDtypeStruct((B, C, L), jnp.float32),
        grid_spec=pltpu.PrefetchScalarGridSpec(
            num_scalar_prefetch=0,
            grid=(B,),
            in_specs=[pl.BlockSpec((1, C, Lp), lambda b: (b, 0, 0)),
                      full_spec(w_pw), full_spec(w_dw),
                      full_spec(wu), full_spec(bu)],
            out_specs=pl.BlockSpec((1, C, L), lambda b: (b, 0, 0)),
            scratch_shapes=[pltpu.VMEM((R, Lp), jnp.float32),   # padded pointwise act.
                            pltpu.VMEM((HC, L), jnp.float32)],  # per-head outputs
        ),
        compiler_params=pltpu.CompilerParams(
            dimension_semantics=("parallel",),
            vmem_limit_bytes=32 * 1024 * 1024,
        ),
        cost_estimate=cost,
    )(xpad, w_pw, w_dw, wu, bu)


def init_params(key, c, heads, kernel_sizes=(3, 15)):
    """Deterministic synthetic parameters (shapes match the torch module)."""
    ks = list(kernel_sizes)
    kmax = max(ks)
    ch = c * heads
    keys = iter(jax.random.split(key, 16))

    def rnd(shape, scale=0.3):
        return (scale * jax.random.normal(next(keys), shape)).astype(jnp.float32)

    raw = {}
    for name in ("q", "k", "v"):
        raw[f"w{name}_pw"] = rnd((ch, c))                 # Conv1d(c, c*h, 1, bias=False)
        raw[f"w{name}_dws"] = [rnd((ch, k)) for k in ks]  # depthwise kernels (no bias)
        raw[f"w{name}_gate"] = rnd((len(ks),), scale=1.0) # dynamic gate
    raw["wu"] = rnd((c, ch))                              # unify_heads Conv1d weight
    raw["bu"] = rnd((c,))                                 # unify_heads Conv1d bias

    # Fold softmax(gate)-weighted sum of centered depthwise kernels into one
    # centered size-kmax kernel (exact, since both convs use "same" padding).
    params = {}
    for name in ("q", "k", "v"):
        g = jax.nn.softmax(raw[f"w{name}_gate"])
        comb = jnp.zeros((ch, kmax), jnp.float32)
        for gi, w, k in zip(g, raw[f"w{name}_dws"], ks):
            off = (kmax - 1) // 2 - (k - 1) // 2
            comb = comb.at[:, off:off + k].add(gi * w)
        params[f"w{name}_pw"] = raw[f"w{name}_pw"]
        params[f"w{name}_dw"] = comb
    params["wu"] = raw["wu"]
    params["bu"] = raw["bu"].reshape(c, 1)
    return raw, params


def ref_forward(x, raw, heads, kernel_sizes=(3, 15)):
    """Pure-JAX reference matching the PyTorch forward (eval mode)."""
    B, C, L = x.shape
    ks = list(kernel_sizes)

    def pw(w, z):
        return jnp.einsum("oc,bcl->bol", w, z)

    def dds(z, name):
        y = pw(raw[f"w{name}_pw"], z)
        g = jax.nn.softmax(raw[f"w{name}_gate"])
        acc = 0.0
        for gi, w, k in zip(g, raw[f"w{name}_dws"], ks):
            p = (k - 1) // 2
            ypad = jnp.pad(y, ((0, 0), (0, 0), (p, p)))
            conv = sum(w[None, :, j:j + 1] * ypad[:, :, j:j + L] for j in range(k))
            acc = acc + gi * conv
        return acc

    q = dds(x, "q").reshape(B * heads, C, L) / C ** 0.25
    k_ = dds(x, "k").reshape(B * heads, C, L) / C ** 0.25
    v = dds(x, "v").reshape(B * heads, C, L)
    dot = jnp.einsum("nci,ncj->nij", k_, q)
    dot = jax.nn.softmax(dot, axis=1)
    out = jnp.einsum("nci,nij->ncj", v, dot).reshape(B, heads * C, L)
    if heads > 1:
        out = pw(raw["wu"], out) + raw["bu"][None, :, None]
    return out


if __name__ == "__main__":
    B, C, L = 2, 4, 16
    HEADS = 2

    key = jax.random.PRNGKey(0)
    kx, kp = jax.random.split(key)
    x = jax.random.normal(kx, (B, C, L), jnp.float32)
    raw, params = init_params(kp, C, HEADS)

    out = ddsct_self_attention(x, params, HEADS)
    out = jax.block_until_ready(out)

    ref = ref_forward(x, raw, HEADS)
    assert out.shape == (B, C, L)
    max_err = float(jnp.max(jnp.abs(out - ref)))
    # Tolerance loosened slightly for the approximate (EUP) softmax reciprocal.
    assert jnp.allclose(out, ref, atol=5e-3, rtol=5e-3), f"max_err={max_err}"
    print("KERNEL_OK")
</pallas_src>

<mosaic_0001>
module attributes {stable_mosaic.version = 11 : i64} {
  func.func @_dds_self_attention_kernel(%arg0: i32, %arg1: memref<1x4x30xf32, #tpu.memory_space<vmem>>, %arg2: memref<24x4xf32, #tpu.memory_space<vmem>>, %arg3: memref<24x15xf32, #tpu.memory_space<vmem>>, %arg4: memref<4x8xf32, #tpu.memory_space<vmem>>, %arg5: memref<4x1xf32, #tpu.memory_space<vmem>>, %arg6: memref<1x4x16xf32, #tpu.memory_space<vmem>>, %arg7: memref<24x30xf32, #tpu.memory_space<vmem>>, %arg8: memref<8x16xf32, #tpu.memory_space<vmem>>) attributes {dimension_semantics = [#tpu.dimension_semantics<parallel>], iteration_bounds = array<i64: 2>, scalar_prefetch = 0 : i64, scratch_operands = 2 : i64, tpu.core_type = #tpu.core_type<tc>, window_params = [{transform_indices = @transform_0, window_bounds = array<i64: 1, 4, 30>}, {pipeline_mode = #tpu.pipeline_mode<synchronous>, transform_indices = @transform_1, window_bounds = array<i64: 24, 4>}, {pipeline_mode = #tpu.pipeline_mode<synchronous>, transform_indices = @transform_2, window_bounds = array<i64: 24, 15>}, {pipeline_mode = #tpu.pipeline_mode<synchronous>, transform_indices = @transform_3, window_bounds = array<i64: 4, 8>}, {pipeline_mode = #tpu.pipeline_mode<synchronous>, transform_indices = @transform_4, window_bounds = array<i64: 4, 1>}, {transform_indices = @transform_5, window_bounds = array<i64: 1, 4, 16>}]} {
    %c0 = arith.constant 0 : index
    %c0_0 = arith.constant 0 : index
    %0 = vector.load %arg2[%c0, %c0_0] : memref<24x4xf32, #tpu.memory_space<vmem>>, vector<24x4xf32>
    %c0_1 = arith.constant 0 : index
    %c0_2 = arith.constant 0 : index
    %c0_3 = arith.constant 0 : index
    %1 = vector.load %arg1[%c0_1, %c0_2, %c0_3] : memref<1x4x30xf32, #tpu.memory_space<vmem>>, vector<1x4x30xf32>
    %2 = vector.shape_cast %1 : vector<1x4x30xf32> to vector<4x30xf32>
    %cst = arith.constant dense<0.000000e+00> : vector<24x30xf32>
    %3 = tpu.matmul %0, %2, %cst {dimension_numbers = #tpu.dot_dimension_numbers<[1], [0], [0], [1], [0, 0, 1, 1], [], []>} : vector<24x4xf32>, vector<4x30xf32>, vector<24x30xf32> -> vector<24x30xf32>
    %c0_4 = arith.constant 0 : index
    %c0_5 = arith.constant 0 : index
    %4 = vector.load %arg7[%c0_4, %c0_5] : memref<24x30xf32, #tpu.memory_space<vmem>>, vector<24x30xf32>
    tpu.vector_store %arg7[%c0_4, %c0_5], %3 {strides = array<i32>} : memref<24x30xf32, #tpu.memory_space<vmem>>, vector<24x30xf32>,
    %c0_6 = arith.constant 0 : index
    %c0_7 = arith.constant 0 : index
    %5 = vector.load %arg3[%c0_6, %c0_7] : memref<24x15xf32, #tpu.memory_space<vmem>>, vector<24x1xf32>
    %c0_8 = arith.constant 0 : index
    %c0_9 = arith.constant 0 : index
    %6 = vector.load %arg7[%c0_8, %c0_9] : memref<24x30xf32, #tpu.memory_space<vmem>>, vector<24x16xf32>
    %7 = vector.broadcast %5 : vector<24x1xf32> to vector<24x16xf32>
    %8 = arith.mulf %7, %6 : vector<24x16xf32>
    %c0_10 = arith.constant 0 : index
    %c1 = arith.constant 1 : index
    %9 = vector.load %arg3[%c0_10, %c1] : memref<24x15xf32, #tpu.memory_space<vmem>>, vector<24x1xf32>
    %c0_11 = arith.constant 0 : index
    %c1_12 = arith.constant 1 : index
    %10 = vector.load %arg7[%c0_11, %c1_12] : memref<24x30xf32, #tpu.memory_space<vmem>>, vector<24x16xf32>
    %11 = vector.broadcast %9 : vector<24x1xf32> to vector<24x16xf32>
    %12 = arith.mulf %11, %10 : vector<24x16xf32>
    %13 = arith.addf %8, %12 : vector<24x16xf32>
    %c0_13 = arith.constant 0 : index
    %c2 = arith.constant 2 : index
    %14 = vector.load %arg3[%c0_13, %c2] : memref<24x15xf32, #tpu.memory_space<vmem>>, vector<24x1xf32>
    %c0_14 = arith.constant 0 : index
    %c2_15 = arith.constant 2 : index
    %15 = vector.load %arg7[%c0_14, %c2_15] : memref<24x30xf32, #tpu.memory_space<vmem>>, vector<24x16xf32>
    %16 = vector.broadcast %14 : vector<24x1xf32> to vector<24x16xf32>
    %17 = arith.mulf %16, %15 : vector<24x16xf32>
    %18 = arith.addf %13, %17 : vector<24x16xf32>
    %c0_16 = arith.constant 0 : index
    %c3 = arith.constant 3 : index
    %19 = vector.load %arg3[%c0_16, %c3] : memref<24x15xf32, #tpu.memory_space<vmem>>, vector<24x1xf32>
    %c0_17 = arith.constant 0 : index
    %c3_18 = arith.constant 3 : index
    %20 = vector.load %arg7[%c0_17, %c3_18] : memref<24x30xf32, #tpu.memory_space<vmem>>, vector<24x16xf32>
    %21 = vector.broadcast %19 : vector<24x1xf32> to vector<24x16xf32>
    %22 = arith.mulf %21, %20 : vector<24x16xf32>
    %23 = arith.addf %18, %22 : vector<24x16xf32>
    %c0_19 = arith.constant 0 : index
    %c4 = arith.constant 4 : index
    %24 = vector.load %arg3[%c0_19, %c4] : memref<24x15xf32, #tpu.memory_space<vmem>>, vector<24x1xf32>
    %c0_20 = arith.constant 0 : index
    %c4_21 = arith.constant 4 : index
    %25 = vector.load %arg7[%c0_20, %c4_21] : memref<24x30xf32, #tpu.memory_space<vmem>>, vector<24x16xf32>
    %26 = vector.broadcast %24 : vector<24x1xf32> to vector<24x16xf32>
    %27 = arith.mulf %26, %25 : vector<24x16xf32>
    %28 = arith.addf %23, %27 : vector<24x16xf32>
    %c0_22 = arith.constant 0 : index
    %c5 = arith.constant 5 : index
    %29 = vector.load %arg3[%c0_22, %c5] : memref<24x15xf32, #tpu.memory_space<vmem>>, vector<24x1xf32>
    %c0_23 = arith.constant 0 : index
    %c5_24 = arith.constant 5 : index
    %30 = vector.load %arg7[%c0_23, %c5_24] : memref<24x30xf32, #tpu.memory_space<vmem>>, vector<24x16xf32>
    %31 = vector.broadcast %29 : vector<24x1xf32> to vector<24x16xf32>
    %32 = arith.mulf %31, %30 : vector<24x16xf32>
    %33 = arith.addf %28, %32 : vector<24x16xf32>
    %c0_25 = arith.constant 0 : index
    %c6 = arith.constant 6 : index
    %34 = vector.load %arg3[%c0_25, %c6] : memref<24x15xf32, #tpu.memory_space<vmem>>, vector<24x1xf32>
    %c0_26 = arith.constant 0 : index
    %c6_27 = arith.constant 6 : index
    %35 = vector.load %arg7[%c0_26, %c6_27] : memref<24x30xf32, #tpu.memory_space<vmem>>, vector<24x16xf32>
    %36 = vector.broadcast %34 : vector<24x1xf32> to vector<24x16xf32>
    %37 = arith.mulf %36, %35 : vector<24x16xf32>
    %38 = arith.addf %33, %37 : vector<24x16xf32>
    %c0_28 = arith.constant 0 : index
    %c7 = arith.constant 7 : index
    %39 = vector.load %arg3[%c0_28, %c7] : memref<24x15xf32, #tpu.memory_space<vmem>>, vector<24x1xf32>
    %c0_29 = arith.constant 0 : index
    %c7_30 = arith.constant 7 : index
    %40 = vector.load %arg7[%c0_29, %c7_30] : memref<24x30xf32, #tpu.memory_space<vmem>>, vector<24x16xf32>
    %41 = vector.broadcast %39 : vector<24x1xf32> to vector<24x16xf32>
    %42 = arith.mulf %41, %40 : vector<24x16xf32>
    %43 = arith.addf %38, %42 : vector<24x16xf32>
    %c0_31 = arith.constant 0 : index
    %c8 = arith.constant 8 : index
    %44 = vector.load %arg3[%c0_31, %c8] : memref<24x15xf32, #tpu.memory_space<vmem>>, vector<24x1xf32>
    %c0_32 = arith.constant 0 : index
    %c8_33 = arith.constant 8 : index
    %45 = vector.load %arg7[%c0_32, %c8_33] : memref<24x30xf32, #tpu.memory_space<vmem>>, vector<24x16xf32>
    %46 = vector.broadcast %44 : vector<24x1xf32> to vector<24x16xf32>
    %47 = arith.mulf %46, %45 : vector<24x16xf32>
    %48 = arith.addf %43, %47 : vector<24x16xf32>
    %c0_34 = arith.constant 0 : index
    %c9 = arith.constant 9 : index
    %49 = vector.load %arg3[%c0_34, %c9] : memref<24x15xf32, #tpu.memory_space<vmem>>, vector<24x1xf32>
    %c0_35 = arith.constant 0 : index
    %c9_36 = arith.constant 9 : index
    %50 = vector.load %arg7[%c0_35, %c9_36] : memref<24x30xf32, #tpu.memory_space<vmem>>, vector<24x16xf32>
    %51 = vector.broadcast %49 : vector<24x1xf32> to vector<24x16xf32>
    %52 = arith.mulf %51, %50 : vector<24x16xf32>
    %53 = arith.addf %48, %52 : vector<24x16xf32>
    %c0_37 = arith.constant 0 : index
    %c10 = arith.constant 10 : index
    %54 = vector.load %arg3[%c0_37, %c10] : memref<24x15xf32, #tpu.memory_space<vmem>>, vector<24x1xf32>
    %c0_38 = arith.constant 0 : index
    %c10_39 = arith.constant 10 : index
    %55 = vector.load %arg7[%c0_38, %c10_39] : memref<24x30xf32, #tpu.memory_space<vmem>>, vector<24x16xf32>
    %56 = vector.broadcast %54 : vector<24x1xf32> to vector<24x16xf32>
    %57 = arith.mulf %56, %55 : vector<24x16xf32>
    %58 = arith.addf %53, %57 : vector<24x16xf32>
    %c0_40 = arith.constant 0 : index
    %c11 = arith.constant 11 : index
    %59 = vector.load %arg3[%c0_40, %c11] : memref<24x15xf32, #tpu.memory_space<vmem>>, vector<24x1xf32>
    %c0_41 = arith.constant 0 : index
    %c11_42 = arith.constant 11 : index
    %60 = vector.load %arg7[%c0_41, %c11_42] : memref<24x30xf32, #tpu.memory_space<vmem>>, vector<24x16xf32>
    %61 = vector.broadcast %59 : vector<24x1xf32> to vector<24x16xf32>
    %62 = arith.mulf %61, %60 : vector<24x16xf32>
    %63 = arith.addf %58, %62 : vector<24x16xf32>
    %c0_43 = arith.constant 0 : index
    %c12 = arith.constant 12 : index
    %64 = vector.load %arg3[%c0_43, %c12] : memref<24x15xf32, #tpu.memory_space<vmem>>, vector<24x1xf32>
    %c0_44 = arith.constant 0 : index
    %c12_45 = arith.constant 12 : index
    %65 = vector.load %arg7[%c0_44, %c12_45] : memref<24x30xf32, #tpu.memory_space<vmem>>, vector<24x16xf32>
    %66 = vector.broadcast %64 : vector<24x1xf32> to vector<24x16xf32>
    %67 = arith.mulf %66, %65 : vector<24x16xf32>
    %68 = arith.addf %63, %67 : vector<24x16xf32>
    %c0_46 = arith.constant 0 : index
    %c13 = arith.constant 13 : index
    %69 = vector.load %arg3[%c0_46, %c13] : memref<24x15xf32, #tpu.memory_space<vmem>>, vector<24x1xf32>
    %c0_47 = arith.constant 0 : index
    %c13_48 = arith.constant 13 : index
    %70 = vector.load %arg7[%c0_47, %c13_48] : memref<24x30xf32, #tpu.memory_space<vmem>>, vector<24x16xf32>
    %71 = vector.broadcast %69 : vector<24x1xf32> to vector<24x16xf32>
    %72 = arith.mulf %71, %70 : vector<24x16xf32>
    %73 = arith.addf %68, %72 : vector<24x16xf32>
    %c0_49 = arith.constant 0 : index
    %c14 = arith.constant 14 : index
    %74 = vector.load %arg3[%c0_49, %c14] : memref<24x15xf32, #tpu.memory_space<vmem>>, vector<24x1xf32>
    %c0_50 = arith.constant 0 : index
    %c14_51 = arith.constant 14 : index
    %75 = vector.load %arg7[%c0_50, %c14_51] : memref<24x30xf32, #tpu.memory_space<vmem>>, vector<24x16xf32>
    %76 = vector.broadcast %74 : vector<24x1xf32> to vector<24x16xf32>
    %77 = arith.mulf %76, %75 : vector<24x16xf32>
    %78 = arith.addf %73, %77 : vector<24x16xf32>
    %79 = vector.extract_strided_slice %78 {offsets = [0, 0], sizes = [8, 16], strides = [1, 1]} : vector<24x16xf32> to vector<8x16xf32>
    %80 = vector.extract_strided_slice %78 {offsets = [8, 0], sizes = [8, 16], strides = [1, 1]} : vector<24x16xf32> to vector<8x16xf32>
    %81 = vector.extract_strided_slice %78 {offsets = [16, 0], sizes = [8, 16], strides = [1, 1]} : vector<24x16xf32> to vector<8x16xf32>
    %82 = vector.extract_strided_slice %79 {offsets = [0, 0], sizes = [4, 16], strides = [1, 1]} : vector<8x16xf32> to vector<4x16xf32>
    %83 = vector.extract_strided_slice %80 {offsets = [0, 0], sizes = [4, 16], strides = [1, 1]} : vector<8x16xf32> to vector<4x16xf32>
    %84 = vector.extract_strided_slice %81 {offsets = [0, 0], sizes = [4, 16], strides = [1, 1]} : vector<8x16xf32> to vector<4x16xf32>
    %cst_52 = arith.constant dense<0.000000e+00> : vector<16x16xf32>
    %85 = tpu.matmul %83, %82, %cst_52 {dimension_numbers = #tpu.dot_dimension_numbers<[0], [0], [1], [1], [0, 1, 1, 1], [], []>} : vector<4x16xf32>, vector<4x16xf32>, vector<16x16xf32> -> vector<16x16xf32>
    %cst_53 = arith.constant dense<0xFF800000> : vector<16xf32>
    %86 = vector.multi_reduction <maximumf>, %85, %cst_53 [0] : vector<16x16xf32> to vector<16xf32>
    %87 = vector.shape_cast %86 : vector<16xf32> to vector<1x16xf32>
    %88 = vector.broadcast %87 : vector<1x16xf32> to vector<16x16xf32>
    %89 = arith.subf %85, %88 : vector<16x16xf32>
    %90 = math.exp %89 : vector<16x16xf32>
    %cst_54 = arith.constant dense<0.000000e+00> : vector<16xf32>
    %91 = vector.multi_reduction <add>, %90, %cst_54 [0] : vector<16x16xf32> to vector<16xf32>
    %92 = vector.shape_cast %91 : vector<16xf32> to vector<1x16xf32>
    %93 = tpu.reciprocal %92 {approx = true} : vector<1x16xf32> -> vector<1x16xf32>
    %94 = vector.broadcast %93 : vector<1x16xf32> to vector<16x16xf32>
    %95 = arith.mulf %90, %94 : vector<16x16xf32>
    %cst_55 = arith.constant dense<0.000000e+00> : vector<4x16xf32>
    %96 = tpu.matmul %84, %95, %cst_55 {dimension_numbers = #tpu.dot_dimension_numbers<[1], [0], [0], [1], [0, 0, 1, 1], [], []>} : vector<4x16xf32>, vector<16x16xf32>, vector<4x16xf32> -> vector<4x16xf32>
    %c0_56 = arith.constant 0 : index
    %c0_57 = arith.constant 0 : index
    %97 = vector.load %arg8[%c0_56, %c0_57] : memref<8x16xf32, #tpu.memory_space<vmem>>, vector<4x16xf32>
    tpu.vector_store %arg8[%c0_56, %c0_57], %96 {strides = array<i32>} : memref<8x16xf32, #tpu.memory_space<vmem>>, vector<4x16xf32>,
    %98 = vector.extract_strided_slice %79 {offsets = [4, 0], sizes = [4, 16], strides = [1, 1]} : vector<8x16xf32> to vector<4x16xf32>
    %99 = vector.extract_strided_slice %80 {offsets = [4, 0], sizes = [4, 16], strides = [1, 1]} : vector<8x16xf32> to vector<4x16xf32>
    %100 = vector.extract_strided_slice %81 {offsets = [4, 0], sizes = [4, 16], strides = [1, 1]} : vector<8x16xf32> to vector<4x16xf32>
    %cst_58 = arith.constant dense<0.000000e+00> : vector<16x16xf32>
    %101 = tpu.matmul %99, %98, %cst_58 {dimension_numbers = #tpu.dot_dimension_numbers<[0], [0], [1], [1], [0, 1, 1, 1], [], []>} : vector<4x16xf32>, vector<4x16xf32>, vector<16x16xf32> -> vector<16x16xf32>
    %cst_59 = arith.constant dense<0xFF800000> : vector<16xf32>
    %102 = vector.multi_reduction <maximumf>, %101, %cst_59 [0] : vector<16x16xf32> to vector<16xf32>
    %103 = vector.shape_cast %102 : vector<16xf32> to vector<1x16xf32>
    %104 = vector.broadcast %103 : vector<1x16xf32> to vector<16x16xf32>
    %105 = arith.subf %101, %104 : vector<16x16xf32>
    %106 = math.exp %105 : vector<16x16xf32>
    %cst_60 = arith.constant dense<0.000000e+00> : vector<16xf32>
    %107 = vector.multi_reduction <add>, %106, %cst_60 [0] : vector<16x16xf32> to vector<16xf32>
    %108 = vector.shape_cast %107 : vector<16xf32> to vector<1x16xf32>
    %109 = tpu.reciprocal %108 {approx = true} : vector<1x16xf32> -> vector<1x16xf32>
    %110 = vector.broadcast %109 : vector<1x16xf32> to vector<16x16xf32>
    %111 = arith.mulf %106, %110 : vector<16x16xf32>
    %cst_61 = arith.constant dense<0.000000e+00> : vector<4x16xf32>
    %112 = tpu.matmul %100, %111, %cst_61 {dimension_numbers = #tpu.dot_dimension_numbers<[1], [0], [0], [1], [0, 0, 1, 1], [], []>} : vector<4x16xf32>, vector<16x16xf32>, vector<4x16xf32> -> vector<4x16xf32>
    %c4_62 = arith.constant 4 : index
    %c0_63 = arith.constant 0 : index
    %113 = vector.load %arg8[%c4_62, %c0_63] : memref<8x16xf32, #tpu.memory_space<vmem>>, vector<4x16xf32>
    tpu.vector_store %arg8[%c4_62, %c0_63], %112 {strides = array<i32>} : memref<8x16xf32, #tpu.memory_space<vmem>>, vector<4x16xf32>,
    %c0_64 = arith.constant 0 : index
    %c0_65 = arith.constant 0 : index
    %114 = vector.load %arg4[%c0_64, %c0_65] : memref<4x8xf32, #tpu.memory_space<vmem>>, vector<4x8xf32>
    %c0_66 = arith.constant 0 : index
    %c0_67 = arith.constant 0 : index
    %115 = vector.load %arg8[%c0_66, %c0_67] : memref<8x16xf32, #tpu.memory_space<vmem>>, vector<8x16xf32>
    %cst_68 = arith.constant dense<0.000000e+00> : vector<4x16xf32>
    %116 = tpu.matmul %114, %115, %cst_68 {dimension_numbers = #tpu.dot_dimension_numbers<[1], [0], [0], [1], [0, 0, 1, 1], [], []>} : vector<4x8xf32>, vector<8x16xf32>, vector<4x16xf32> -> vector<4x16xf32>
    %c0_69 = arith.constant 0 : index
    %c0_70 = arith.constant 0 : index
    %117 = vector.load %arg5[%c0_69, %c0_70] : memref<4x1xf32, #tpu.memory_space<vmem>>, vector<4x1xf32>
    %118 = vector.broadcast %117 : vector<4x1xf32> to vector<4x16xf32>
    %119 = arith.addf %116, %118 : vector<4x16xf32>
    %c0_71 = arith.constant 0 : index
    %c0_72 = arith.constant 0 : index
    %c0_73 = arith.constant 0 : index
    %120 = vector.load %arg6[%c0_71, %c0_72, %c0_73] : memref<1x4x16xf32, #tpu.memory_space<vmem>>, vector<1x4x16xf32>
    %121 = vector.shape_cast %120 : vector<1x4x16xf32> to vector<4x16xf32>
    %122 = vector.shape_cast %119 : vector<4x16xf32> to vector<1x4x16xf32>
    tpu.vector_store %arg6[%c0_71, %c0_72, %c0_73], %122 {strides = array<i32>} : memref<1x4x16xf32, #tpu.memory_space<vmem>>, vector<1x4x16xf32>,
    return
  }
  func.func @transform_0(%arg0: i32) -> (i32, i32, i32) {
    %c0_i32 = arith.constant 0 : i32
    %c0_i32_0 = arith.constant 0 : i32
    %c0_i32_1 = arith.constant 0 : i32
    return %arg0, %c0_i32, %c0_i32_0 : i32, i32, i32
  }
  func.func @transform_1(%arg0: i32) -> (i32, i32) {
    %c0_i32 = arith.constant 0 : i32
    %c0_i32_0 = arith.constant 0 : i32
    %c0_i32_1 = arith.constant 0 : i32
    return %c0_i32, %c0_i32_0 : i32, i32
  }
  func.func @transform_2(%arg0: i32) -> (i32, i32) {
    %c0_i32 = arith.constant 0 : i32
    %c0_i32_0 = arith.constant 0 : i32
    %c0_i32_1 = arith.constant 0 : i32
    return %c0_i32, %c0_i32_0 : i32, i32
  }
  func.func @transform_3(%arg0: i32) -> (i32, i32) {
    %c0_i32 = arith.constant 0 : i32
    %c0_i32_0 = arith.constant 0 : i32
    %c0_i32_1 = arith.constant 0 : i32
    return %c0_i32, %c0_i32_0 : i32, i32
  }
  func.func @transform_4(%arg0: i32) -> (i32, i32) {
    %c0_i32 = arith.constant 0 : i32
    %c0_i32_0 = arith.constant 0 : i32
    %c0_i32_1 = arith.constant 0 : i32
    return %c0_i32, %c0_i32_0 : i32, i32
  }
  func.func @transform_5(%arg0: i32) -> (i32, i32, i32) {
    %c0_i32 = arith.constant 0 : i32
    %c0_i32_0 = arith.constant 0 : i32
    %c0_i32_1 = arith.constant 0 : i32
    return %arg0, %c0_i32, %c0_i32_0 : i32, i32, i32
  }
}

</mosaic_0001>

<llo_original>
// kernel: tpu_custom_call.1
$region0: #{tpu_custom_call.1}
  #allocation0 [shape = 'u32[]', space=smem, size = 0x4, offset = 0x4, fixed_abs, tag = 'smem constant byte address 0x4 - core index']
  #allocation1 [shape = 'u32[144,128]{1,0:T(1,128)}', space=vmem, size = 0x12000, scoped, tag = 'internal scratch']
  #allocation2 [shape = 'f32[24,30]{1,0:T(8,128)}', space=vmem, size = 0x3000, scoped, tag = 'scratch operand']
  #allocation3 [shape = 'f32[8,16]{1,0:T(8,128)}', space=vmem, size = 0x1000, scoped, tag = 'scratch operand']
  %s0 = inlined_call_operand.vmem [shape: f32[2,4,30], index: 0, kind: input, shape index: {}]
  %s1 = inlined_call_operand.vmem [shape: f32[24,4], index: 1, kind: input, shape index: {}]
  %s2 = inlined_call_operand.vmem [shape: f32[24,15], index: 2, kind: input, shape index: {}]
  %s3 = inlined_call_operand.vmem [shape: f32[4,8], index: 3, kind: input, shape index: {}]
  %s4 = inlined_call_operand.vmem [shape: f32[4,1], index: 4, kind: input, shape index: {}]
  %s5 = inlined_call_operand.hbm [shape: f32[2,4,16], index: 5, kind: output, shape index: {}]
  %s6 = sld [smem:[#allocation0]]
  $region53: #{tpu_custom_call.1} parent=0
    _
  %s8 = ssub.s32 1, %s6
  %s9 = scalar_select 0, %s8, %s6
  $region1: #{tpu_custom_call.1} parent=0
    #allocation4 [shape = 'u8[4096]{0}', space=vmem, size = 0x1000, scoped, tag = 'output window, operand 0']
    #allocation5 [shape = 's32[2]{0}', space=sflag, size = 0x8, scoped, tag = 'scoped memory for tpu_custom_call.1']
    %10 = vsyncpa [#allocation5], 0
    %s11 = scalar_lea.sflag [#allocation5], 1
    %12 = vsyncpa %s11, 0
    loop: start=0, step=1, limit=4
    $region2: #{tpu_custom_call.1} parent=1 // loop_pre_header
      _
    $region3: #{tpu_custom_call.1} parent=1 // loop_header
      %s14 = sphi 0, %s18
      %p15 = scmp.ge.s32.totalorder %s14, 4
      %s24 = sphi 0, %s26
      %s27 = sphi 0, %s24
      %s28 = sphi 0, %s27
      %s44 = sphi 0, %s28
      %s48 = sphi 0, %s48
      %s50 = sphi 0, %s48
      %s51 = sphi 0, %s50
      %s65 = sphi 0, %s51
      %s69 = sphi 0, %s69
      %s71 = sphi 0, %s69
      %s72 = sphi 0, %s71
      %s86 = sphi 0, %s72
      %s90 = sphi 0, %s90
      %s92 = sphi 0, %s90
      %s93 = sphi 0, %s92
      %s107 = sphi 0, %s93
      %s111 = sphi 0, %s111
      %s113 = sphi 0, %s111
      %s114 = sphi 0, %s113
      %s128 = sphi 0, %s114
      %s134 = sphi 0, %s136
      %s137 = sphi 0, %s134
      %s138 = sphi 0, %s137
      %s154 = sphi 0, %s138
    $region4: #{tpu_custom_call.1} parent=1 // loop_header_branch
      %17 = sbr.rel (%p15) target = $region8
    $region5: #{tpu_custom_call.1} parent=1 // loop_body
      %s19 = ssub.s32 %s14, 1
      %s20 = ssub.s32 %s14, 2
      %s21 = sadd.s32 %s14, 1
      %s22 = ssub.s32 %s14, %s21
      %p23 = scmp.eq.s32.totalorder %s22, 0
      %s25 = sadd.s32 %s24, 1
      %s26 = scalar_select %p23, %s24, %s25
      %p29 = pneg %p23
      %p30 = scmp.eq.s32.totalorder %s14, 1
      %p31 = por %p29, %p30
      %p32 = scmp.ne.s32.totalorder %s24, %s27
      %p33 = scmp.eq.s32.totalorder %s14, 0
      %p34 = por %p32, %p33
      %p35 = scmp.ne.s32.totalorder %s24, %s27
      %p36 = scmp.eq.s32.totalorder %s19, 1
      %p37 = por %p35, %p36
      %p38 = scmp.ne.s32.totalorder %s27, %s28
      %p39 = scmp.eq.s32.totalorder %s19, 0
      %p40 = por %p38, %p39
      %p41 = scmp.ne.s32.totalorder %s27, %s28
      %p42 = scmp.eq.s32.totalorder %s20, 1
      %p43 = por %p41, %p42
      %p45 = scmp.ne.s32.totalorder %s28, %s44
      %p46 = scmp.eq.s32.totalorder %s20, 0
      %p47 = por %p45, %p46
      %s49 = sadd.s32 %s48, 1
      %p52 = scmp.eq.s32.totalorder %s14, 1
      %p53 = scmp.ne.s32.totalorder %s48, %s50
      %p54 = scmp.eq.s32.totalorder %s14, 0
      %p55 = por %p53, %p54
      %p56 = scmp.ne.s32.totalorder %s48, %s50
      %p57 = scmp.eq.s32.totalorder %s19, 1
      %p58 = por %p56, %p57
      %p59 = scmp.ne.s32.totalorder %s50, %s51
      %p60 = scmp.eq.s32.totalorder %s19, 0
      %p61 = por %p59, %p60
      %p62 = scmp.ne.s32.totalorder %s50, %s51
      %p63 = scmp.eq.s32.totalorder %s20, 1
      %p64 = por %p62, %p63
      %p66 = scmp.ne.s32.totalorder %s51, %s65
      %p67 = scmp.eq.s32.totalorder %s20, 0
      %p68 = por %p66, %p67
      %s70 = sadd.s32 %s69, 1
      %p73 = scmp.eq.s32.totalorder %s14, 1
      %p74 = scmp.ne.s32.totalorder %s69, %s71
      %p75 = scmp.eq.s32.totalorder %s14, 0
      %p76 = por %p74, %p75
      %p77 = scmp.ne.s32.totalorder %s69, %s71
      %p78 = scmp.eq.s32.totalorder %s19, 1
      %p79 = por %p77, %p78
      %p80 = scmp.ne.s32.totalorder %s71, %s72
      %p81 = scmp.eq.s32.totalorder %s19, 0
      %p82 = por %p80, %p81
      %p83 = scmp.ne.s32.totalorder %s71, %s72
      %p84 = scmp.eq.s32.totalorder %s20, 1
      %p85 = por %p83, %p84
      %p87 = scmp.ne.s32.totalorder %s72, %s86
      %p88 = scmp.eq.s32.totalorder %s20, 0
      %p89 = por %p87, %p88
      %s91 = sadd.s32 %s90, 1
      %p94 = scmp.eq.s32.totalorder %s14, 1
      %p95 = scmp.ne.s32.totalorder %s90, %s92
      %p96 = scmp.eq.s32.totalorder %s14, 0
      %p97 = por %p95, %p96
      %p98 = scmp.ne.s32.totalorder %s90, %s92
      %p99 = scmp.eq.s32.totalorder %s19, 1
      %p100 = por %p98, %p99
      %p101 = scmp.ne.s32.totalorder %s92, %s93
      %p102 = scmp.eq.s32.totalorder %s19, 0
      %p103 = por %p101, %p102
      %p104 = scmp.ne.s32.totalorder %s92, %s93
      %p105 = scmp.eq.s32.totalorder %s20, 1
      %p106 = por %p104, %p105
      %p108 = scmp.ne.s32.totalorder %s93, %s107
      %p109 = scmp.eq.s32.totalorder %s20, 0
      %p110 = por %p108, %p109
      %s112 = sadd.s32 %s111, 1
      %p115 = scmp.eq.s32.totalorder %s14, 1
      %p116 = scmp.ne.s32.totalorder %s111, %s113
      %p117 = scmp.eq.s32.totalorder %s14, 0
      %p118 = por %p116, %p117
      %p119 = scmp.ne.s32.totalorder %s111, %s113
      %p120 = scmp.eq.s32.totalorder %s19, 1
      %p121 = por %p119, %p120
      %p122 = scmp.ne.s32.totalorder %s113, %s114
      %p123 = scmp.eq.s32.totalorder %s19, 0
      %p124 = por %p122, %p123
      %p125 = scmp.ne.s32.totalorder %s113, %s114
      %p126 = scmp.eq.s32.totalorder %s20, 1
      %p127 = por %p125, %p126
      %p129 = scmp.ne.s32.totalorder %s114, %s128
      %p130 = scmp.eq.s32.totalorder %s20, 0
      %p131 = por %p129, %p130
      %s132 = ssub.s32 %s14, %s21
      %p133 = scmp.eq.s32.totalorder %s132, 0
      %s135 = sadd.s32 %s134, 1
      %s136 = scalar_select %p133, %s134, %s135
      %p139 = pneg %p133
      %p140 = scmp.eq.s32.totalorder %s14, 1
      %p141 = por %p139, %p140
      %p142 = scmp.ne.s32.totalorder %s134, %s137
      %p143 = scmp.eq.s32.totalorder %s14, 0
      %p144 = por %p142, %p143
      %p145 = scmp.ne.s32.totalorder %s134, %s137
      %p146 = scmp.eq.s32.totalorder %s19, 1
      %p147 = por %p145, %p146
      %p148 = scmp.ne.s32.totalorder %s137, %s138
      %p149 = scmp.eq.s32.totalorder %s19, 0
      %p150 = por %p148, %p149
      %p151 = scmp.ne.s32.totalorder %s137, %s138
      %p152 = scmp.eq.s32.totalorder %s20, 1
      %p153 = por %p151, %p152
      %p155 = scmp.ne.s32.totalorder %s138, %s154
      %p156 = scmp.eq.s32.totalorder %s20, 0
      %p157 = por %p155, %p156
      %p158 = scmp.le.s32.totalorder 1, %s14
      %p159 = scmp.lt.s32.totalorder %s14, 3
      %p160 = pnand %p158, %p159
      %p161 = pneg %p160
      // Predicated region
      $region9: #{tpu_custom_call.1} parent=5 // pred_check
        _
      $region10: #{tpu_custom_call.1} parent=5 // pred_check_branch
        %163 = sbr.rel (%p160) target = $region12
      $region11: #{tpu_custom_call.1} parent=5 // pred_region
        %s164 = ssub.s32 %s14, 1
        // Predicated region
        $region13: #{tpu_custom_call.1} parent=11 // pred_check
          %p165 = pneg %p61
        $region14: #{tpu_custom_call.1} parent=11 // pred_check_branch
          %167 = sbr.rel (%p165) target = $region16
        $region15: #{tpu_custom_call.1} parent=11 // pred_region
          _
        $region16: #{tpu_custom_call.1} parent=11 // pred_fallthru
          _
        // Predicated region
        $region17: #{tpu_custom_call.1} parent=11 // pred_check
          %p168 = pneg %p82
        $region18: #{tpu_custom_call.1} parent=11 // pred_check_branch
          %170 = sbr.rel (%p168) target = $region20
        $region19: #{tpu_custom_call.1} parent=11 // pred_region
          _
        $region20: #{tpu_custom_call.1} parent=11 // pred_fallthru
          _
        // Predicated region
        $region21: #{tpu_custom_call.1} parent=11 // pred_check
          %p171 = pneg %p103
        $region22: #{tpu_custom_call.1} parent=11 // pred_check_branch
          %173 = sbr.rel (%p171) target = $region24
        $region23: #{tpu_custom_call.1} parent=11 // pred_region
          _
        $region24: #{tpu_custom_call.1} parent=11 // pred_fallthru
          _
        // Predicated region
        $region25: #{tpu_custom_call.1} parent=11 // pred_check
          %p174 = pneg %p124
        $region26: #{tpu_custom_call.1} parent=11 // pred_check_branch
          %176 = sbr.rel (%p174) target = $region28
        $region27: #{tpu_custom_call.1} parent=11 // pred_region
          _
        $region28: #{tpu_custom_call.1} parent=11 // pred_fallthru
          _
      $region12: #{tpu_custom_call.1} parent=5 // pred_fallthru
        _
      %p177 = scmp.lt.s32.totalorder %s14, 2
      // Predicated region
      $region29: #{tpu_custom_call.1} parent=5 // pred_check
        %p178 = pneg %p177
      $region30: #{tpu_custom_call.1} parent=5 // pred_check_branch
        %180 = sbr.rel (%p178) target = $region32
      $region31: #{tpu_custom_call.1} parent=5 // pred_region
        // Predicated region
        $region33: #{tpu_custom_call.1} parent=31 // pred_check
          %p181 = pneg %p34
        $region34: #{tpu_custom_call.1} parent=31 // pred_check_branch
          %183 = sbr.rel (%p181) target = $region36
        $region35: #{tpu_custom_call.1} parent=31 // pred_region
          %p184 = scmp.lt.s32.totalorder %s14, 1
          %s185 = scalar_select %p184, %s14, 1
          %s186 = smul.addr %s185, 4
          %s187 = scalar_lea.vmem %s0, %s186
        $region36: #{tpu_custom_call.1} parent=31 // pred_fallthru
          _
      $region32: #{tpu_custom_call.1} parent=5 // pred_fallthru
        _
      %p188 = scmp.le.s32.totalorder 1, %s14
      %p189 = scmp.lt.s32.totalorder %s14, 3
      %p190 = pnand %p188, %p189
      %p191 = pneg %p190
      // Predicated region
      $region37: #{tpu_custom_call.1} parent=5 // pred_check
        _
      $region38: #{tpu_custom_call.1} parent=5 // pred_check_branch
        %193 = sbr.rel (%p190) target = $region40
      $region39: #{tpu_custom_call.1} parent=5 // pred_region
        %s194 = ssub.s32 %s14, 1
        %p195 = scmp.lt.s32.totalorder %s19, 1
        %s196 = scalar_select %p195, %s19, 1
        %s197 = smul.addr %s196, 4
        %s198 = scalar_lea.vmem %s0, %s197
        %p199 = pneg %p40
        %p200 = pneg %p37
        %p201 = pneg %p61
        %p202 = pneg %p58
        %p203 = pneg %p82
        %p204 = pneg %p79
        %p205 = pneg %p103
        %p206 = pneg %p100
        %p207 = pneg %p124
        %p208 = pneg %p121
        %p209 = pneg %p150
        %p210 = pneg %p147
        %s211 = sand.u32 %s137, 1
        %s212 = scalar_lea.sflag [#allocation5], %s211
        %s213 = sand.u32 %s137, 1
        %s214 = smul.addr %s213, 4
        %s215 = scalar_lea.vmem [#allocation4], %s214
        %p216 = scmp.lt.s32.totalorder %s19, 1
        %s217 = scalar_select %p216, %s19, 1
        %s218 = smul.addr %s217, 4
        %s219 = scalar_lea.vmem %s0, %s218
        %v220 = vld [vmem:[%s1] sm:$0xff]
        %v221 = vld [vmem:[%s1 + $0x8] sm:$0xff]
        %v222 = vld [vmem:[%s1 + $0x10] sm:$0xff]
        %v223 = vld [vmem:[%s219] sm:$0xf]
        %vm224 = vcmask 31744
        %v226 = vsel %vm224, %v220, 0
        %v229 = vsel %vm224, %v221, 0
        %v232 = vsel %vm224, %v222, 0
        %vm234 = vcmask 1043456
        %v236 = vsel %vm234, %v223, 0
        %238 = vmatprep.subr.mxu0 0.0
        %239 = vmatpush1.msra.mxu0 %v236
        %240 = vmatprep.subr.mxu0 0.0
        %241 = vmatpush1.msra.mxu0 0.0
        %242 = vmatprep.subr.mxu0 0.0
        %243 = vmatpush1.msra.mxu0 0.0
        %244 = vmatprep.subr.mxu0 0.0
        %245 = vmatpush1.msra.mxu0 0.0
        %246 = vmatprep.subr.mxu0 0.0
        %247 = vmatpush1.msra.mxu0 0.0
        %248 = vmatprep.subr.mxu0 0.0
        %249 = vmatpush1.msra.mxu0 0.0
        %250 = vmatprep.subr.mxu0 0.0
        %251 = vmatpush1.msra.mxu0 0.0
        %252 = vmatprep.subr.mxu0 0.0
        %253 = vmatpush1.msra.mxu0 0.0
        %254 = vmatprep.subr.mxu0 0.0
        %255 = vmatpush1.msra.mxu0 0.0
        %256 = vmatprep.subr.mxu0 0.0
        %257 = vmatpush1.msra.mxu0 0.0
        %258 = vmatprep.subr.mxu0 0.0
        %259 = vmatpush1.msra.mxu0 0.0
        %260 = vmatprep.subr.mxu0 0.0
        %261 = vmatpush1.msra.mxu0 0.0
        %262 = vmatprep.subr.mxu0 0.0
        %263 = vmatpush1.msra.mxu0 0.0
        %264 = vmatprep.subr.mxu0 0.0
        %265 = vmatpush1.msra.mxu0 0.0
        %266 = vmatprep.subr.mxu0 0.0
        %267 = vmatpush1.msra.mxu0 0.0
        %268 = vmatprep.subr.mxu0 0.0
        %269 = vmatpush1.msra.mxu0 0.0
        %270 = vmatprep.subr.mxu0 0.0
        %271 = vmatpush1.msra.mxu0 0.0
        %272 = vmatprep.subr.mxu0 0.0
        %273 = vmatpush1.msra.mxu0 0.0
        %274 = vmatprep.subr.mxu0 0.0
        %275 = vmatpush1.msra.mxu0 0.0
        %276 = vmatprep.subr.mxu0 0.0
        %277 = vmatpush1.msra.mxu0 0.0
        %278 = vmatprep.subr.mxu0 0.0
        %279 = vmatpush1.msra.mxu0 0.0
        %280 = vmatprep.subr.mxu0 0.0
        %281 = vmatpush1.msra.mxu0 0.0
        %282 = vmatprep.subr.mxu0 0.0
        %283 = vmatpush1.msra.mxu0 0.0
        %284 = vmatprep.subr.mxu0 0.0
        %285 = vmatpush1.msra.mxu0 0.0
        %286 = vmatprep.subr.mxu0 0.0
        %287 = vmatpush1.msra.mxu0 0.0
        %288 = vmatprep.subr.mxu0 0.0
        %289 = vmatpush1.msra.mxu0 0.0
        %290 = vmatprep.subr.mxu0 0.0
        %291 = vmatpush1.msra.mxu0 0.0
        %292 = vmatprep.subr.mxu0 0.0
        %293 = vmatpush1.msra.mxu0 0.0
        %294 = vmatprep.subr.mxu0 0.0
        %295 = vmatpush1.msra.mxu0 0.0
        %296 = vmatprep.subr.mxu0 0.0
        %297 = vmatpush1.msra.mxu0 0.0
        %298 = vmatprep.subr.mxu0 0.0
        %299 = vmatpush1.msra.mxu0 0.0
        %300 = vmatprep.subr.mxu0 0.0
        %301 = vmatpush1.msra.mxu0 0.0
        %302 = vmatprep.mubr.f32.mxu0 0.0
        %303 = vmatmul.mubr.f32.gmra.mrb[0].mxu0 %v226
        %v304 = vpop.f32.mrb[0].mxu0
        %v305 = vadd.f32 0.0, %v304
        %v306 = vpop.f32.mrb[0].mxu0
        %307 = vmatprep.mubr.f32.mxu0 0.0
        %308 = vmatmul.mubr.f32.gmra.mrb[0].mxu0 %v229
        %v309 = vpop.f32.mrb[0].mxu0
        %v310 = vadd.f32 0.0, %v309
        %v311 = vpop.f32.mrb[0].mxu0
        %312 = vmatprep.mubr.f32.mxu0 0.0
        %313 = vmatmul.mubr.f32.gmra.mrb[0].mxu0 %v232
        %v314 = vpop.f32.mrb[0].mxu0
        %v315 = vadd.f32 0.0, %v314
        %v316 = vpop.f32.mrb[0].mxu0
        %317 = vdwg.mxu0
        %vm318 = vcmask 244736
        %319 = vst.msk [vmem:[#allocation2] sm:$0xff] %vm318, %v305
        %320 = vst.msk [vmem:[#allocation2 + $0x8] sm:$0xff] %vm318, %v310
        %321 = vst.msk [vmem:[#allocation2 + $0x10] sm:$0xff] %vm318, %v315
        %v322 = vld [vmem:[%s2] sm:$0xff]
        %v323 = vld [vmem:[%s2 + $0x8] sm:$0xff]
        %v324 = vld [vmem:[%s2 + $0x10] sm:$0xff]
        %v325 = vld [vmem:[#allocation2] sm:$0xff]
        %v326 = vld [vmem:[#allocation2 + $0x8] sm:$0xff]
        %v327 = vld [vmem:[#allocation2 + $0x10] sm:$0xff]
        %329 = vset.pattern.permute.xlu0 0
        %330 = vperm.xlu0 %329, %v322
        %v331 = vpop.permute.xlu0 %330
        %334 = vset.pattern.permute.xlu0 0
        %335 = vperm.xlu0 %334, %v323
        %v336 = vpop.permute.xlu0 %335
        %339 = vset.pattern.permute.xlu0 0
        %340 = vperm.xlu0 %339, %v324
        %v341 = vpop.permute.xlu0 %340
        %v343 = vmul.f32 %v331, %v325
        %v344 = vmul.f32 %v336, %v326
        %v345 = vmul.f32 %v341, %v327
        %346 = vset.pattern.permute.xlu0 1
        %347 = vperm.xlu0 %346, %v322
        %v348 = vpop.permute.xlu0 %347
        %350 = vset.pattern.permute.xlu0 1
        %351 = vperm.xlu0 %350, %v323
        %v352 = vpop.permute.xlu0 %351
        %354 = vset.pattern.permute.xlu0 1
        %355 = vperm.xlu0 %354, %v324
        %v356 = vpop.permute.xlu0 %355
        %v358 = vmul.f32 %v348, %v325
        %v359 = vmul.f32 %v352, %v326
        %v360 = vmul.f32 %v356, %v327
        %364 = vrot.lane.b32.xlu0 %v358, 127
        %v365 = vpop.permute.xlu0 %364
        %366 = vrot.lane.b32.xlu0 %v359, 127
        %v367 = vpop.permute.xlu0 %366
        %368 = vrot.lane.b32.xlu0 %v360, 127
        %v369 = vpop.permute.xlu0 %368
        %v373 = vadd.f32 %v343, %v365
        %v374 = vadd.f32 %v344, %v367
        %v375 = vadd.f32 %v345, %v369
        %376 = vset.pattern.permute.xlu0 2
        %377 = vperm.xlu0 %376, %v322
        %v378 = vpop.permute.xlu0 %377
        %380 = vset.pattern.permute.xlu0 2
        %381 = vperm.xlu0 %380, %v323
        %v382 = vpop.permute.xlu0 %381
        %384 = vset.pattern.permute.xlu0 2
        %385 = vperm.xlu0 %384, %v324
        %v386 = vpop.permute.xlu0 %385
        %v388 = vmul.f32 %v378, %v325
        %v389 = vmul.f32 %v382, %v326
        %v390 = vmul.f32 %v386, %v327
        %394 = vrot.lane.b32.xlu0 %v388, 126
        %v395 = vpop.permute.xlu0 %394
        %396 = vrot.lane.b32.xlu0 %v389, 126
        %v397 = vpop.permute.xlu0 %396
        %398 = vrot.lane.b32.xlu0 %v390, 126
        %v399 = vpop.permute.xlu0 %398
        %v403 = vadd.f32 %v373, %v395
        %v404 = vadd.f32 %v374, %v397
        %v405 = vadd.f32 %v375, %v399
        %406 = vset.pattern.permute.xlu0 3
        %407 = vperm.xlu0 %406, %v322
        %v408 = vpop.permute.xlu0 %407
        %410 = vset.pattern.permute.xlu0 3
        %411 = vperm.xlu0 %410, %v323
        %v412 = vpop.permute.xlu0 %411
        %414 = vset.pattern.permute.xlu0 3
        %415 = vperm.xlu0 %414, %v324
        %v416 = vpop.permute.xlu0 %415
        %v418 = vmul.f32 %v408, %v325
        %v419 = vmul.f32 %v412, %v326
        %v420 = vmul.f32 %v416, %v327
        %424 = vrot.lane.b32.xlu0 %v418, 125
        %v425 = vpop.permute.xlu0 %424
        %426 = vrot.lane.b32.xlu0 %v419, 125
        %v427 = vpop.permute.xlu0 %426
        %428 = vrot.lane.b32.xlu0 %v420, 125
        %v429 = vpop.permute.xlu0 %428
        %v433 = vadd.f32 %v403, %v425
        %v434 = vadd.f32 %v404, %v427
        %v435 = vadd.f32 %v405, %v429
        %436 = vset.pattern.permute.xlu0 4
        %437 = vperm.xlu0 %436, %v322
        %v438 = vpop.permute.xlu0 %437
        %440 = vset.pattern.permute.xlu0 4
        %441 = vperm.xlu0 %440, %v323
        %v442 = vpop.permute.xlu0 %441
        %444 = vset.pattern.permute.xlu0 4
        %445 = vperm.xlu0 %444, %v324
        %v446 = vpop.permute.xlu0 %445
        %v448 = vmul.f32 %v438, %v325
        %v449 = vmul.f32 %v442, %v326
        %v450 = vmul.f32 %v446, %v327
        %454 = vrot.lane.b32.xlu0 %v448, 124
        %v455 = vpop.permute.xlu0 %454
        %456 = vrot.lane.b32.xlu0 %v449, 124
        %v457 = vpop.permute.xlu0 %456
        %458 = vrot.lane.b32.xlu0 %v450, 124
        %v459 = vpop.permute.xlu0 %458
        %v463 = vadd.f32 %v433, %v455
        %v464 = vadd.f32 %v434, %v457
        %v465 = vadd.f32 %v435, %v459
        %466 = vset.pattern.permute.xlu0 5
        %467 = vperm.xlu0 %466, %v322
        %v468 = vpop.permute.xlu0 %467
        %470 = vset.pattern.permute.xlu0 5
        %471 = vperm.xlu0 %470, %v323
        %v472 = vpop.permute.xlu0 %471
        %474 = vset.pattern.permute.xlu0 5
        %475 = vperm.xlu0 %474, %v324
        %v476 = vpop.permute.xlu0 %475
        %v478 = vmul.f32 %v468, %v325
        %v479 = vmul.f32 %v472, %v326
        %v480 = vmul.f32 %v476, %v327
        %484 = vrot.lane.b32.xlu0 %v478, 123
        %v485 = vpop.permute.xlu0 %484
        %486 = vrot.lane.b32.xlu0 %v479, 123
        %v487 = vpop.permute.xlu0 %486
        %488 = vrot.lane.b32.xlu0 %v480, 123
        %v489 = vpop.permute.xlu0 %488
        %v493 = vadd.f32 %v463, %v485
        %v494 = vadd.f32 %v464, %v487
        %v495 = vadd.f32 %v465, %v489
        %496 = vset.pattern.permute.xlu0 6
        %497 = vperm.xlu0 %496, %v322
        %v498 = vpop.permute.xlu0 %497
        %500 = vset.pattern.permute.xlu0 6
        %501 = vperm.xlu0 %500, %v323
        %v502 = vpop.permute.xlu0 %501
        %504 = vset.pattern.permute.xlu0 6
        %505 = vperm.xlu0 %504, %v324
        %v506 = vpop.permute.xlu0 %505
        %v508 = vmul.f32 %v498, %v325
        %v509 = vmul.f32 %v502, %v326
        %v510 = vmul.f32 %v506, %v327
        %514 = vrot.lane.b32.xlu0 %v508, 122
        %v515 = vpop.permute.xlu0 %514
        %516 = vrot.lane.b32.xlu0 %v509, 122
        %v517 = vpop.permute.xlu0 %516
        %518 = vrot.lane.b32.xlu0 %v510, 122
        %v519 = vpop.permute.xlu0 %518
        %v523 = vadd.f32 %v493, %v515
        %v524 = vadd.f32 %v494, %v517
        %v525 = vadd.f32 %v495, %v519
        %526 = vset.pattern.permute.xlu0 7
        %527 = vperm.xlu0 %526, %v322
        %v528 = vpop.permute.xlu0 %527
        %530 = vset.pattern.permute.xlu0 7
        %531 = vperm.xlu0 %530, %v323
        %v532 = vpop.permute.xlu0 %531
        %534 = vset.pattern.permute.xlu0 7
        %535 = vperm.xlu0 %534, %v324
        %v536 = vpop.permute.xlu0 %535
        %v538 = vmul.f32 %v528, %v325
        %v539 = vmul.f32 %v532, %v326
        %v540 = vmul.f32 %v536, %v327
        %544 = vrot.lane.b32.xlu0 %v538, 121
        %v545 = vpop.permute.xlu0 %544
        %546 = vrot.lane.b32.xlu0 %v539, 121
        %v547 = vpop.permute.xlu0 %546
        %548 = vrot.lane.b32.xlu0 %v540, 121
        %v549 = vpop.permute.xlu0 %548
        %v553 = vadd.f32 %v523, %v545
        %v554 = vadd.f32 %v524, %v547
        %v555 = vadd.f32 %v525, %v549
        %556 = vset.pattern.permute.xlu0 8
        %557 = vperm.xlu0 %556, %v322
        %v558 = vpop.permute.xlu0 %557
        %560 = vset.pattern.permute.xlu0 8
        %561 = vperm.xlu0 %560, %v323
        %v562 = vpop.permute.xlu0 %561
        %564 = vset.pattern.permute.xlu0 8
        %565 = vperm.xlu0 %564, %v324
        %v566 = vpop.permute.xlu0 %565
        %v568 = vmul.f32 %v558, %v325
        %v569 = vmul.f32 %v562, %v326
        %v570 = vmul.f32 %v566, %v327
        %574 = vrot.lane.b32.xlu0 %v568, 120
        %v575 = vpop.permute.xlu0 %574
        %576 = vrot.lane.b32.xlu0 %v569, 120
        %v577 = vpop.permute.xlu0 %576
        %578 = vrot.lane.b32.xlu0 %v570, 120
        %v579 = vpop.permute.xlu0 %578
        %v583 = vadd.f32 %v553, %v575
        %v584 = vadd.f32 %v554, %v577
        %v585 = vadd.f32 %v555, %v579
        %586 = vset.pattern.permute.xlu0 9
        %587 = vperm.xlu0 %586, %v322
        %v588 = vpop.permute.xlu0 %587
        %590 = vset.pattern.permute.xlu0 9
        %591 = vperm.xlu0 %590, %v323
        %v592 = vpop.permute.xlu0 %591
        %594 = vset.pattern.permute.xlu0 9
        %595 = vperm.xlu0 %594, %v324
        %v596 = vpop.permute.xlu0 %595
        %v598 = vmul.f32 %v588, %v325
        %v599 = vmul.f32 %v592, %v326
        %v600 = vmul.f32 %v596, %v327
        %604 = vrot.lane.b32.xlu0 %v598, 119
        %v605 = vpop.permute.xlu0 %604
        %606 = vrot.lane.b32.xlu0 %v599, 119
        %v607 = vpop.permute.xlu0 %606
        %608 = vrot.lane.b32.xlu0 %v600, 119
        %v609 = vpop.permute.xlu0 %608
        %v613 = vadd.f32 %v583, %v605
        %v614 = vadd.f32 %v584, %v607
        %v615 = vadd.f32 %v585, %v609
        %616 = vset.pattern.permute.xlu0 10
        %617 = vperm.xlu0 %616, %v322
        %v618 = vpop.permute.xlu0 %617
        %620 = vset.pattern.permute.xlu0 10
        %621 = vperm.xlu0 %620, %v323
        %v622 = vpop.permute.xlu0 %621
        %624 = vset.pattern.permute.xlu0 10
        %625 = vperm.xlu0 %624, %v324
        %v626 = vpop.permute.xlu0 %625
        %v628 = vmul.f32 %v618, %v325
        %v629 = vmul.f32 %v622, %v326
        %v630 = vmul.f32 %v626, %v327
        %634 = vrot.lane.b32.xlu0 %v628, 118
        %v635 = vpop.permute.xlu0 %634
        %636 = vrot.lane.b32.xlu0 %v629, 118
        %v637 = vpop.permute.xlu0 %636
        %638 = vrot.lane.b32.xlu0 %v630, 118
        %v639 = vpop.permute.xlu0 %638
        %v643 = vadd.f32 %v613, %v635
        %v644 = vadd.f32 %v614, %v637
        %v645 = vadd.f32 %v615, %v639
        %646 = vset.pattern.permute.xlu0 11
        %647 = vperm.xlu0 %646, %v322
        %v648 = vpop.permute.xlu0 %647
        %650 = vset.pattern.permute.xlu0 11
        %651 = vperm.xlu0 %650, %v323
        %v652 = vpop.permute.xlu0 %651
        %654 = vset.pattern.permute.xlu0 11
        %655 = vperm.xlu0 %654, %v324
        %v656 = vpop.permute.xlu0 %655
        %v658 = vmul.f32 %v648, %v325
        %v659 = vmul.f32 %v652, %v326
        %v660 = vmul.f32 %v656, %v327
        %664 = vrot.lane.b32.xlu0 %v658, 117
        %v665 = vpop.permute.xlu0 %664
        %666 = vrot.lane.b32.xlu0 %v659, 117
        %v667 = vpop.permute.xlu0 %666
        %668 = vrot.lane.b32.xlu0 %v660, 117
        %v669 = vpop.permute.xlu0 %668
        %v673 = vadd.f32 %v643, %v665
        %v674 = vadd.f32 %v644, %v667
        %v675 = vadd.f32 %v645, %v669
        %676 = vset.pattern.permute.xlu0 12
        %677 = vperm.xlu0 %676, %v322
        %v678 = vpop.permute.xlu0 %677
        %680 = vset.pattern.permute.xlu0 12
        %681 = vperm.xlu0 %680, %v323
        %v682 = vpop.permute.xlu0 %681
        %684 = vset.pattern.permute.xlu0 12
        %685 = vperm.xlu0 %684, %v324
        %v686 = vpop.permute.xlu0 %685
        %v688 = vmul.f32 %v678, %v325
        %v689 = vmul.f32 %v682, %v326
        %v690 = vmul.f32 %v686, %v327
        %694 = vrot.lane.b32.xlu0 %v688, 116
        %v695 = vpop.permute.xlu0 %694
        %696 = vrot.lane.b32.xlu0 %v689, 116
        %v697 = vpop.permute.xlu0 %696
        %698 = vrot.lane.b32.xlu0 %v690, 116
        %v699 = vpop.permute.xlu0 %698
        %v703 = vadd.f32 %v673, %v695
        %v704 = vadd.f32 %v674, %v697
        %v705 = vadd.f32 %v675, %v699
        %706 = vset.pattern.permute.xlu0 13
        %707 = vperm.xlu0 %706, %v322
        %v708 = vpop.permute.xlu0 %707
        %710 = vset.pattern.permute.xlu0 13
        %711 = vperm.xlu0 %710, %v323
        %v712 = vpop.permute.xlu0 %711
        %714 = vset.pattern.permute.xlu0 13
        %715 = vperm.xlu0 %714, %v324
        %v716 = vpop.permute.xlu0 %715
        %v718 = vmul.f32 %v708, %v325
        %v719 = vmul.f32 %v712, %v326
        %v720 = vmul.f32 %v716, %v327
        %724 = vrot.lane.b32.xlu0 %v718, 115
        %v725 = vpop.permute.xlu0 %724
        %726 = vrot.lane.b32.xlu0 %v719, 115
        %v727 = vpop.permute.xlu0 %726
        %728 = vrot.lane.b32.xlu0 %v720, 115
        %v729 = vpop.permute.xlu0 %728
        %v733 = vadd.f32 %v703, %v725
        %v734 = vadd.f32 %v704, %v727
        %v735 = vadd.f32 %v705, %v729
        %736 = vset.pattern.permute.xlu0 14
        %737 = vperm.xlu0 %736, %v322
        %v738 = vpop.permute.xlu0 %737
        %740 = vset.pattern.permute.xlu0 14
        %741 = vperm.xlu0 %740, %v323
        %v742 = vpop.permute.xlu0 %741
        %744 = vset.pattern.permute.xlu0 14
        %745 = vperm.xlu0 %744, %v324
        %v746 = vpop.permute.xlu0 %745
        %v748 = vmul.f32 %v738, %v325
        %v749 = vmul.f32 %v742, %v326
        %v750 = vmul.f32 %v746, %v327
        %754 = vrot.lane.b32.xlu0 %v748, 114
        %v755 = vpop.permute.xlu0 %754
        %756 = vrot.lane.b32.xlu0 %v749, 114
        %v757 = vpop.permute.xlu0 %756
        %758 = vrot.lane.b32.xlu0 %v750, 114
        %v759 = vpop.permute.xlu0 %758
        %v763 = vadd.f32 %v733, %v755
        %v764 = vadd.f32 %v734, %v757
        %v765 = vadd.f32 %v735, %v759
        %766 = vxpose.xlu0.b32.start [1/16] %v764, 128
        %767 = vxpose.xlu0.b32.cont [2/16] 0.0, 128
        %768 = vxpose.xlu0.b32.cont [3/16] 0.0, 128
        %769 = vxpose.xlu0.b32.cont [4/16] 0.0, 128
        %770 = vxpose.xlu0.b32.cont [5/16] 0.0, 128
        %771 = vxpose.xlu0.b32.cont [6/16] 0.0, 128
        %772 = vxpose.xlu0.b32.cont [7/16] 0.0, 128
        %773 = vxpose.xlu0.b32.cont [8/16] 0.0, 128
        %774 = vxpose.xlu0.b32.cont [9/16] 0.0, 128
        %775 = vxpose.xlu0.b32.cont [10/16] 0.0, 128
        %776 = vxpose.xlu0.b32.cont [11/16] 0.0, 128
        %777 = vxpose.xlu0.b32.cont [12/16] 0.0, 128
        %778 = vxpose.xlu0.b32.cont [13/16] 0.0, 128
        %779 = vxpose.xlu0.b32.cont [14/16] 0.0, 128
        %780 = vxpose.xlu0.b32.cont [15/16] 0.0, 128
        %781 = vxpose.xlu0.b32.end [16/16] 0.0, 128
        %v782 = vpop.trf.xlu0
        %v783 = vpop.trf.xlu0
        %v784 = vpop.trf.xlu0
        %v785 = vpop.trf.xlu0
        %v786 = vpop.trf.xlu0
        %v787 = vpop.trf.xlu0
        %v788 = vpop.trf.xlu0
        %v789 = vpop.trf.xlu0
        %v790 = vpop.trf.xlu0
        %v791 = vpop.trf.xlu0
        %v792 = vpop.trf.xlu0
        %v793 = vpop.trf.xlu0
        %v794 = vpop.trf.xlu0
        %v795 = vpop.trf.xlu0
        %v796 = vpop.trf.xlu0
        %v797 = vpop.trf.xlu0
        %v799 = vsel %vm224, %v782, 0
        %v802 = vsel %vm224, %v783, 0
        %v805 = vsel %vm234, %v763, 0
        %807 = vmatprep.subr.mxu0 0.0
        %808 = vmatpush1.msra.mxu0 %v805
        %809 = vmatprep.subr.mxu0 0.0
        %810 = vmatpush1.msra.mxu0 0.0
        %811 = vmatprep.subr.mxu0 0.0
        %812 = vmatpush1.msra.mxu0 0.0
        %813 = vmatprep.subr.mxu0 0.0
        %814 = vmatpush1.msra.mxu0 0.0
        %815 = vmatprep.subr.mxu0 0.0
        %816 = vmatpush1.msra.mxu0 0.0
        %817 = vmatprep.subr.mxu0 0.0
        %818 = vmatpush1.msra.mxu0 0.0
        %819 = vmatprep.subr.mxu0 0.0
        %820 = vmatpush1.msra.mxu0 0.0
        %821 = vmatprep.subr.mxu0 0.0
        %822 = vmatpush1.msra.mxu0 0.0
        %823 = vmatprep.subr.mxu0 0.0
        %824 = vmatpush1.msra.mxu0 0.0
        %825 = vmatprep.subr.mxu0 0.0
        %826 = vmatpush1.msra.mxu0 0.0
        %827 = vmatprep.subr.mxu0 0.0
        %828 = vmatpush1.msra.mxu0 0.0
        %829 = vmatprep.subr.mxu0 0.0
        %830 = vmatpush1.msra.mxu0 0.0
        %831 = vmatprep.subr.mxu0 0.0
        %832 = vmatpush1.msra.mxu0 0.0
        %833 = vmatprep.subr.mxu0 0.0
        %834 = vmatpush1.msra.mxu0 0.0
        %835 = vmatprep.subr.mxu0 0.0
        %836 = vmatpush1.msra.mxu0 0.0
        %837 = vmatprep.subr.mxu0 0.0
        %838 = vmatpush1.msra.mxu0 0.0
        %839 = vmatprep.subr.mxu0 0.0
        %840 = vmatpush1.msra.mxu0 0.0
        %841 = vmatprep.subr.mxu0 0.0
        %842 = vmatpush1.msra.mxu0 0.0
        %843 = vmatprep.subr.mxu0 0.0
        %844 = vmatpush1.msra.mxu0 0.0
        %845 = vmatprep.subr.mxu0 0.0
        %846 = vmatpush1.msra.mxu0 0.0
        %847 = vmatprep.subr.mxu0 0.0
        %848 = vmatpush1.msra.mxu0 0.0
        %849 = vmatprep.subr.mxu0 0.0
        %850 = vmatpush1.msra.mxu0 0.0
        %851 = vmatprep.subr.mxu0 0.0
        %852 = vmatpush1.msra.mxu0 0.0
        %853 = vmatprep.subr.mxu0 0.0
        %854 = vmatpush1.msra.mxu0 0.0
        %855 = vmatprep.subr.mxu0 0.0
        %856 = vmatpush1.msra.mxu0 0.0
        %857 = vmatprep.subr.mxu0 0.0
        %858 = vmatpush1.msra.mxu0 0.0
        %859 = vmatprep.subr.mxu0 0.0
        %860 = vmatpush1.msra.mxu0 0.0
        %861 = vmatprep.subr.mxu0 0.0
        %862 = vmatpush1.msra.mxu0 0.0
        %863 = vmatprep.subr.mxu0 0.0
        %864 = vmatpush1.msra.mxu0 0.0
        %865 = vmatprep.subr.mxu0 0.0
        %866 = vmatpush1.msra.mxu0 0.0
        %867 = vmatprep.subr.mxu0 0.0
        %868 = vmatpush1.msra.mxu0 0.0
        %869 = vmatprep.subr.mxu0 0.0
        %870 = vmatpush1.msra.mxu0 0.0
        %871 = vmatprep.mubr.f32.mxu0 0.0
        %872 = vmatmul.mubr.f32.gmra.mrb[0].mxu0 %v799
        %v873 = vpop.f32.mrb[0].mxu0
        %v874 = vadd.f32 0.0, %v873
        %v875 = vpop.f32.mrb[0].mxu0
        %876 = vmatprep.mubr.f32.mxu0 0.0
        %877 = vmatmul.mubr.f32.gmra.mrb[0].mxu0 %v802
        %v878 = vpop.f32.mrb[0].mxu0
        %v879 = vadd.f32 0.0, %v878
        %v880 = vpop.f32.mrb[0].mxu0
        %881 = vdwg.mxu0
        %vm882 = vcmask 130048
        %v883 = vsel %vm882, %v874, -inf
        %v884 = vsel %vm882, %v879, -inf
        %v885 = vmax.f32 %v883, %v884
        %v886 = vrot.slane %v885, 4
        %v887 = vmax.f32 %v885, %v886
        %v888 = vrot.slane %v887, 2
        %v889 = vmax.f32 %v887, %v888
        %v890 = vrot.slane %v889, 1
        %v891 = vmax.f32 %v889, %v890
        %v892 = vsub.f32 %v874, %v891
        %v893 = vsub.f32 %v879, %v891
        %v894 = vmul.f32 %v892, 1.442695
        %v895 = vpow.pop %v894
        %v896 = vmul.f32 %v893, 1.442695
        %v897 = vpow.pop %v896
        %v898 = vsel %vm882, %v895, 0.0
        %v899 = vsel %vm882, %v897, 0.0
        %v900 = vadd.f32 %v898, %v899
        %v901 = vrot.slane %v900, 4
        %v902 = vadd.f32 %v900, %v901
        %v903 = vrot.slane %v902, 2
        %v904 = vadd.f32 %v902, %v903
        %v905 = vrot.slane %v904, 1
        %v906 = vadd.f32 %v904, %v905
        %v907 = vrcp.pop %v906
        %v908 = vmul.f32 %v895, %v907
        %v909 = vmul.f32 %v897, %v907
        %v911 = vsel %vm882, %v765, 0
        %913 = vmatprep.subr.mxu0 0.0
        %914 = vmatpush1.msra.mxu0 %v908
        %915 = vmatprep.subr.mxu0 0.0
        %916 = vmatpush1.msra.mxu0 %v909
        %917 = vmatprep.subr.mxu0 0.0
        %918 = vmatpush1.msra.mxu0 0.0
        %919 = vmatprep.subr.mxu0 0.0
        %920 = vmatpush1.msra.mxu0 0.0
        %921 = vmatprep.subr.mxu0 0.0
        %922 = vmatpush1.msra.mxu0 0.0
        %923 = vmatprep.subr.mxu0 0.0
        %924 = vmatpush1.msra.mxu0 0.0
        %925 = vmatprep.subr.mxu0 0.0
        %926 = vmatpush1.msra.mxu0 0.0
        %927 = vmatprep.subr.mxu0 0.0
        %928 = vmatpush1.msra.mxu0 0.0
        %929 = vmatprep.subr.mxu0 0.0
        %930 = vmatpush1.msra.mxu0 0.0
        %931 = vmatprep.subr.mxu0 0.0
        %932 = vmatpush1.msra.mxu0 0.0
        %933 = vmatprep.subr.mxu0 0.0
        %934 = vmatpush1.msra.mxu0 0.0
        %935 = vmatprep.subr.mxu0 0.0
        %936 = vmatpush1.msra.mxu0 0.0
        %937 = vmatprep.subr.mxu0 0.0
        %938 = vmatpush1.msra.mxu0 0.0
        %939 = vmatprep.subr.mxu0 0.0
        %940 = vmatpush1.msra.mxu0 0.0
        %941 = vmatprep.subr.mxu0 0.0
        %942 = vmatpush1.msra.mxu0 0.0
        %943 = vmatprep.subr.mxu0 0.0
        %944 = vmatpush1.msra.mxu0 0.0
        %945 = vmatprep.subr.mxu0 0.0
        %946 = vmatpush1.msra.mxu0 0.0
        %947 = vmatprep.subr.mxu0 0.0
        %948 = vmatpush1.msra.mxu0 0.0
        %949 = vmatprep.subr.mxu0 0.0
        %950 = vmatpush1.msra.mxu0 0.0
        %951 = vmatprep.subr.mxu0 0.0
        %952 = vmatpush1.msra.mxu0 0.0
        %953 = vmatprep.subr.mxu0 0.0
        %954 = vmatpush1.msra.mxu0 0.0
        %955 = vmatprep.subr.mxu0 0.0
        %956 = vmatpush1.msra.mxu0 0.0
        %957 = vmatprep.subr.mxu0 0.0
        %958 = vmatpush1.msra.mxu0 0.0
        %959 = vmatprep.subr.mxu0 0.0
        %960 = vmatpush1.msra.mxu0 0.0
        %961 = vmatprep.subr.mxu0 0.0
        %962 = vmatpush1.msra.mxu0 0.0
        %963 = vmatprep.subr.mxu0 0.0
        %964 = vmatpush1.msra.mxu0 0.0
        %965 = vmatprep.subr.mxu0 0.0
        %966 = vmatpush1.msra.mxu0 0.0
        %967 = vmatprep.subr.mxu0 0.0
        %968 = vmatpush1.msra.mxu0 0.0
        %969 = vmatprep.subr.mxu0 0.0
        %970 = vmatpush1.msra.mxu0 0.0
        %971 = vmatprep.subr.mxu0 0.0
        %972 = vmatpush1.msra.mxu0 0.0
        %973 = vmatprep.subr.mxu0 0.0
        %974 = vmatpush1.msra.mxu0 0.0
        %975 = vmatprep.subr.mxu0 0.0
        %976 = vmatpush1.msra.mxu0 0.0
        %977 = vmatprep.mubr.f32.mxu0 0.0
        %978 = vmatmul.mubr.f32.gmra.mrb[0].mxu0 %v911
        %v979 = vpop.f32.mrb[0].mxu0
        %v980 = vadd.f32 0.0, %v979
        %v981 = vpop.f32.mrb[0].mxu0
        %982 = vdwg.mxu0
        %vm983 = vcmask 125952
        %984 = vst.msk [vmem:[#allocation3] sm:$0xf] %vm983, %v980
        %v986 = vrot.slane %v764, 4
        %988 = vxpose.xlu0.b32.start [1/16] %v986, 128
        %989 = vxpose.xlu0.b32.cont [2/16] 0.0, 128
        %990 = vxpose.xlu0.b32.cont [3/16] 0.0, 128
        %991 = vxpose.xlu0.b32.cont [4/16] 0.0, 128
        %992 = vxpose.xlu0.b32.cont [5/16] 0.0, 128
        %993 = vxpose.xlu0.b32.cont [6/16] 0.0, 128
        %994 = vxpose.xlu0.b32.cont [7/16] 0.0, 128
        %995 = vxpose.xlu0.b32.cont [8/16] 0.0, 128
        %996 = vxpose.xlu0.b32.cont [9/16] 0.0, 128
        %997 = vxpose.xlu0.b32.cont [10/16] 0.0, 128
        %998 = vxpose.xlu0.b32.cont [11/16] 0.0, 128
        %999 = vxpose.xlu0.b32.cont [12/16] 0.0, 128
        %1000 = vxpose.xlu0.b32.cont [13/16] 0.0, 128
        %1001 = vxpose.xlu0.b32.cont [14/16] 0.0, 128
        %1002 = vxpose.xlu0.b32.cont [15/16] 0.0, 128
        %1003 = vxpose.xlu0.b32.end [16/16] 0.0, 128
        %v1004 = vpop.trf.xlu0
        %v1005 = vpop.trf.xlu0
        %v1006 = vpop.trf.xlu0
        %v1007 = vpop.trf.xlu0
        %v1008 = vpop.trf.xlu0
        %v1009 = vpop.trf.xlu0
        %v1010 = vpop.trf.xlu0
        %v1011 = vpop.trf.xlu0
        %v1012 = vpop.trf.xlu0
        %v1013 = vpop.trf.xlu0
        %v1014 = vpop.trf.xlu0
        %v1015 = vpop.trf.xlu0
        %v1016 = vpop.trf.xlu0
        %v1017 = vpop.trf.xlu0
        %v1018 = vpop.trf.xlu0
        %v1019 = vpop.trf.xlu0
        %v1020 = vrot.slane %v763, 4
        %v1022 = vsel %vm224, %v1004, 0
        %v1025 = vsel %vm224, %v1005, 0
        %v1027 = vsel %vm234, %v1020, 0
        %1029 = vmatprep.subr.mxu0 0.0
        %1030 = vmatpush1.msra.mxu0 %v1027
        %1031 = vmatprep.subr.mxu0 0.0
        %1032 = vmatpush1.msra.mxu0 0.0
        %1033 = vmatprep.subr.mxu0 0.0
        %1034 = vmatpush1.msra.mxu0 0.0
        %1035 = vmatprep.subr.mxu0 0.0
        %1036 = vmatpush1.msra.mxu0 0.0
        %1037 = vmatprep.subr.mxu0 0.0
        %1038 = vmatpush1.msra.mxu0 0.0
        %1039 = vmatprep.subr.mxu0 0.0
        %1040 = vmatpush1.msra.mxu0 0.0
        %1041 = vmatprep.subr.mxu0 0.0
        %1042 = vmatpush1.msra.mxu0 0.0
        %1043 = vmatprep.subr.mxu0 0.0
        %1044 = vmatpush1.msra.mxu0 0.0
        %1045 = vmatprep.subr.mxu0 0.0
        %1046 = vmatpush1.msra.mxu0 0.0
        %1047 = vmatprep.subr.mxu0 0.0
        %1048 = vmatpush1.msra.mxu0 0.0
        %1049 = vmatprep.subr.mxu0 0.0
        %1050 = vmatpush1.msra.mxu0 0.0
        %1051 = vmatprep.subr.mxu0 0.0
        %1052 = vmatpush1.msra.mxu0 0.0
        %1053 = vmatprep.subr.mxu0 0.0
        %1054 = vmatpush1.msra.mxu0 0.0
        %1055 = vmatprep.subr.mxu0 0.0
        %1056 = vmatpush1.msra.mxu0 0.0
        %1057 = vmatprep.subr.mxu0 0.0
        %1058 = vmatpush1.msra.mxu0 0.0
        %1059 = vmatprep.subr.mxu0 0.0
        %1060 = vmatpush1.msra.mxu0 0.0
        %1061 = vmatprep.subr.mxu0 0.0
        %1062 = vmatpush1.msra.mxu0 0.0
        %1063 = vmatprep.subr.mxu0 0.0
        %1064 = vmatpush1.msra.mxu0 0.0
        %1065 = vmatprep.subr.mxu0 0.0
        %1066 = vmatpush1.msra.mxu0 0.0
        %1067 = vmatprep.subr.mxu0 0.0
        %1068 = vmatpush1.msra.mxu0 0.0
        %1069 = vmatprep.subr.mxu0 0.0
        %1070 = vmatpush1.msra.mxu0 0.0
        %1071 = vmatprep.subr.mxu0 0.0
        %1072 = vmatpush1.msra.mxu0 0.0
        %1073 = vmatprep.subr.mxu0 0.0
        %1074 = vmatpush1.msra.mxu0 0.0
        %1075 = vmatprep.subr.mxu0 0.0
        %1076 = vmatpush1.msra.mxu0 0.0
        %1077 = vmatprep.subr.mxu0 0.0
        %1078 = vmatpush1.msra.mxu0 0.0
        %1079 = vmatprep.subr.mxu0 0.0
        %1080 = vmatpush1.msra.mxu0 0.0
        %1081 = vmatprep.subr.mxu0 0.0
        %1082 = vmatpush1.msra.mxu0 0.0
        %1083 = vmatprep.subr.mxu0 0.0
        %1084 = vmatpush1.msra.mxu0 0.0
        %1085 = vmatprep.subr.mxu0 0.0
        %1086 = vmatpush1.msra.mxu0 0.0
        %1087 = vmatprep.subr.mxu0 0.0
        %1088 = vmatpush1.msra.mxu0 0.0
        %1089 = vmatprep.subr.mxu0 0.0
        %1090 = vmatpush1.msra.mxu0 0.0
        %1091 = vmatprep.subr.mxu0 0.0
        %1092 = vmatpush1.msra.mxu0 0.0
        %1093 = vmatprep.mubr.f32.mxu0 0.0
        %1094 = vmatmul.mubr.f32.gmra.mrb[0].mxu0 %v1022
        %v1095 = vpop.f32.mrb[0].mxu0
        %v1096 = vadd.f32 0.0, %v1095
        %v1097 = vpop.f32.mrb[0].mxu0
        %1098 = vmatprep.mubr.f32.mxu0 0.0
        %1099 = vmatmul.mubr.f32.gmra.mrb[0].mxu0 %v1025
        %v1100 = vpop.f32.mrb[0].mxu0
        %v1101 = vadd.f32 0.0, %v1100
        %v1102 = vpop.f32.mrb[0].mxu0
        %1103 = vdwg.mxu0
        %v1104 = vsel %vm882, %v1096, -inf
        %v1105 = vsel %vm882, %v1101, -inf
        %v1106 = vmax.f32 %v1104, %v1105
        %v1107 = vrot.slane %v1106, 4
        %v1108 = vmax.f32 %v1106, %v1107
        %v1109 = vrot.slane %v1108, 2
        %v1110 = vmax.f32 %v1108, %v1109
        %v1111 = vrot.slane %v1110, 1
        %v1112 = vmax.f32 %v1110, %v1111
        %v1113 = vsub.f32 %v1096, %v1112
        %v1114 = vsub.f32 %v1101, %v1112
        %v1115 = vmul.f32 %v1113, 1.442695
        %v1116 = vpow.pop %v1115
        %v1117 = vmul.f32 %v1114, 1.442695
        %v1118 = vpow.pop %v1117
        %v1119 = vsel %vm882, %v1116, 0.0
        %v1120 = vsel %vm882, %v1118, 0.0
        %v1121 = vadd.f32 %v1119, %v1120
        %v1122 = vrot.slane %v1121, 4
        %v1123 = vadd.f32 %v1121, %v1122
        %v1124 = vrot.slane %v1123, 2
        %v1125 = vadd.f32 %v1123, %v1124
        %v1126 = vrot.slane %v1125, 1
        %v1127 = vadd.f32 %v1125, %v1126
        %v1128 = vrcp.pop %v1127
        %v1129 = vmul.f32 %v1116, %v1128
        %v1130 = vmul.f32 %v1118, %v1128
        %v1131 = vrot.slane %v765, 4
        %v1132 = vsel %vm882, %v1131, 0
        %1134 = vmatprep.subr.mxu0 0.0
        %1135 = vmatpush1.msra.mxu0 %v1129
        %1136 = vmatprep.subr.mxu0 0.0
        %1137 = vmatpush1.msra.mxu0 %v1130
        %1138 = vmatprep.subr.mxu0 0.0
        %1139 = vmatpush1.msra.mxu0 0.0
        %1140 = vmatprep.subr.mxu0 0.0
        %1141 = vmatpush1.msra.mxu0 0.0
        %1142 = vmatprep.subr.mxu0 0.0
        %1143 = vmatpush1.msra.mxu0 0.0
        %1144 = vmatprep.subr.mxu0 0.0
        %1145 = vmatpush1.msra.mxu0 0.0
        %1146 = vmatprep.subr.mxu0 0.0
        %1147 = vmatpush1.msra.mxu0 0.0
        %1148 = vmatprep.subr.mxu0 0.0
        %1149 = vmatpush1.msra.mxu0 0.0
        %1150 = vmatprep.subr.mxu0 0.0
        %1151 = vmatpush1.msra.mxu0 0.0
        %1152 = vmatprep.subr.mxu0 0.0
        %1153 = vmatpush1.msra.mxu0 0.0
        %1154 = vmatprep.subr.mxu0 0.0
        %1155 = vmatpush1.msra.mxu0 0.0
        %1156 = vmatprep.subr.mxu0 0.0
        %1157 = vmatpush1.msra.mxu0 0.0
        %1158 = vmatprep.subr.mxu0 0.0
        %1159 = vmatpush1.msra.mxu0 0.0
        %1160 = vmatprep.subr.mxu0 0.0
        %1161 = vmatpush1.msra.mxu0 0.0
        %1162 = vmatprep.subr.mxu0 0.0
        %1163 = vmatpush1.msra.mxu0 0.0
        %1164 = vmatprep.subr.mxu0 0.0
        %1165 = vmatpush1.msra.mxu0 0.0
        %1166 = vmatprep.subr.mxu0 0.0
        %1167 = vmatpush1.msra.mxu0 0.0
        %1168 = vmatprep.subr.mxu0 0.0
        %1169 = vmatpush1.msra.mxu0 0.0
        %1170 = vmatprep.subr.mxu0 0.0
        %1171 = vmatpush1.msra.mxu0 0.0
        %1172 = vmatprep.subr.mxu0 0.0
        %1173 = vmatpush1.msra.mxu0 0.0
        %1174 = vmatprep.subr.mxu0 0.0
        %1175 = vmatpush1.msra.mxu0 0.0
        %1176 = vmatprep.subr.mxu0 0.0
        %1177 = vmatpush1.msra.mxu0 0.0
        %1178 = vmatprep.subr.mxu0 0.0
        %1179 = vmatpush1.msra.mxu0 0.0
        %1180 = vmatprep.subr.mxu0 0.0
        %1181 = vmatpush1.msra.mxu0 0.0
        %1182 = vmatprep.subr.mxu0 0.0
        %1183 = vmatpush1.msra.mxu0 0.0
        %1184 = vmatprep.subr.mxu0 0.0
        %1185 = vmatpush1.msra.mxu0 0.0
        %1186 = vmatprep.subr.mxu0 0.0
        %1187 = vmatpush1.msra.mxu0 0.0
        %1188 = vmatprep.subr.mxu0 0.0
        %1189 = vmatpush1.msra.mxu0 0.0
        %1190 = vmatprep.subr.mxu0 0.0
        %1191 = vmatpush1.msra.mxu0 0.0
        %1192 = vmatprep.subr.mxu0 0.0
        %1193 = vmatpush1.msra.mxu0 0.0
        %1194 = vmatprep.subr.mxu0 0.0
        %1195 = vmatpush1.msra.mxu0 0.0
        %1196 = vmatprep.subr.mxu0 0.0
        %1197 = vmatpush1.msra.mxu0 0.0
        %1198 = vmatprep.mubr.f32.mxu0 0.0
        %1199 = vmatmul.mubr.f32.gmra.mrb[0].mxu0 %v1132
        %v1200 = vpop.f32.mrb[0].mxu0
        %v1201 = vadd.f32 0.0, %v1200
        %v1202 = vpop.f32.mrb[0].mxu0
        %1203 = vdwg.mxu0
        %1204 = vst.msk [vmem:[#allocation3 + $0x4] sm:$0xf] %vm983, %v1201
        %v1205 = vld [vmem:[%s3] sm:$0xf]
        %v1206 = vld [vmem:[#allocation3] sm:$0xff]
        %v1207 = vld [vmem:[%s4] sm:$0xf]
        %1209 = vset.pattern.permute.xlu0 0
        %1210 = vperm.xlu0 %1209, %v1207
        %v1211 = vpop.permute.xlu0 %1210
        %vm1213 = vcmask 64512
        %v1215 = vsel %vm1213, %v1205, 0
        %1217 = vmatprep.subr.mxu0 0.0
        %1218 = vmatpush1.msra.mxu0 %v1206
        %1219 = vmatprep.subr.mxu0 0.0
        %1220 = vmatpush1.msra.mxu0 0.0
        %1221 = vmatprep.subr.mxu0 0.0
        %1222 = vmatpush1.msra.mxu0 0.0
        %1223 = vmatprep.subr.mxu0 0.0
        %1224 = vmatpush1.msra.mxu0 0.0
        %1225 = vmatprep.subr.mxu0 0.0
        %1226 = vmatpush1.msra.mxu0 0.0
        %1227 = vmatprep.subr.mxu0 0.0
        %1228 = vmatpush1.msra.mxu0 0.0
        %1229 = vmatprep.subr.mxu0 0.0
        %1230 = vmatpush1.msra.mxu0 0.0
        %1231 = vmatprep.subr.mxu0 0.0
        %1232 = vmatpush1.msra.mxu0 0.0
        %1233 = vmatprep.subr.mxu0 0.0
        %1234 = vmatpush1.msra.mxu0 0.0
        %1235 = vmatprep.subr.mxu0 0.0
        %1236 = vmatpush1.msra.mxu0 0.0
        %1237 = vmatprep.subr.mxu0 0.0
        %1238 = vmatpush1.msra.mxu0 0.0
        %1239 = vmatprep.subr.mxu0 0.0
        %1240 = vmatpush1.msra.mxu0 0.0
        %1241 = vmatprep.subr.mxu0 0.0
        %1242 = vmatpush1.msra.mxu0 0.0
        %1243 = vmatprep.subr.mxu0 0.0
        %1244 = vmatpush1.msra.mxu0 0.0
        %1245 = vmatprep.subr.mxu0 0.0
        %1246 = vmatpush1.msra.mxu0 0.0
        %1247 = vmatprep.subr.mxu0 0.0
        %1248 = vmatpush1.msra.mxu0 0.0
        %1249 = vmatprep.subr.mxu0 0.0
        %1250 = vmatpush1.msra.mxu0 0.0
        %1251 = vmatprep.subr.mxu0 0.0
        %1252 = vmatpush1.msra.mxu0 0.0
        %1253 = vmatprep.subr.mxu0 0.0
        %1254 = vmatpush1.msra.mxu0 0.0
        %1255 = vmatprep.subr.mxu0 0.0
        %1256 = vmatpush1.msra.mxu0 0.0
        %1257 = vmatprep.subr.mxu0 0.0
        %1258 = vmatpush1.msra.mxu0 0.0
        %1259 = vmatprep.subr.mxu0 0.0
        %1260 = vmatpush1.msra.mxu0 0.0
        %1261 = vmatprep.subr.mxu0 0.0
        %1262 = vmatpush1.msra.mxu0 0.0
        %1263 = vmatprep.subr.mxu0 0.0
        %1264 = vmatpush1.msra.mxu0 0.0
        %1265 = vmatprep.subr.mxu0 0.0
        %1266 = vmatpush1.msra.mxu0 0.0
        %1267 = vmatprep.subr.mxu0 0.0
        %1268 = vmatpush1.msra.mxu0 0.0
        %1269 = vmatprep.subr.mxu0 0.0
        %1270 = vmatpush1.msra.mxu0 0.0
        %1271 = vmatprep.subr.mxu0 0.0
        %1272 = vmatpush1.msra.mxu0 0.0
        %1273 = vmatprep.subr.mxu0 0.0
        %1274 = vmatpush1.msra.mxu0 0.0
        %1275 = vmatprep.subr.mxu0 0.0
        %1276 = vmatpush1.msra.mxu0 0.0
        %1277 = vmatprep.subr.mxu0 0.0
        %1278 = vmatpush1.msra.mxu0 0.0
        %1279 = vmatprep.subr.mxu0 0.0
        %1280 = vmatpush1.msra.mxu0 0.0
        %1281 = vmatprep.mubr.f32.mxu0 0.0
        %1282 = vmatmul.mubr.f32.gmra.mrb[0].mxu0 %v1215
        %v1283 = vpop.f32.mrb[0].mxu0
        %v1284 = vadd.f32 %v1211, %v1283
        %v1285 = vpop.f32.mrb[0].mxu0
        %1286 = vdwg.mxu0
        %1287 = vst.msk [vmem:[%s215] sm:$0xf] %vm983, %v1284
        %s1288 = sand.u32 %s137, 1
        %s1289 = scalar_lea.sflag [#allocation5], %s1288
        %s1290 = sand.u32 %s137, 1
        %s1291 = smul.addr %s1290, 4
        %s1292 = scalar_lea.vmem [#allocation4], %s1291
        // Predicated region
        $region41: #{tpu_custom_call.1} parent=39 // pred_check
          %p1293 = pneg %p147
        $region42: #{tpu_custom_call.1} parent=39 // pred_check_branch
          %1295 = sbr.rel (%p1293) target = $region44
        $region43: #{tpu_custom_call.1} parent=39 // pred_region
          %s1297 = ssub.s32 64, 64
          %1298 = vsyncadd %s1289, %s1297
          %s1299 = smul.addr %s19, 64
          %s1300 = scalar_lea.hbm %s5, %s1299
          %s1302 = sshll.u32 %s1292, 4
          %s1303 = int_to_ptr.vmem [resolvable:$true] %s1302
          %1305 = dma.vmem_to_hbm [thread:$0]  %s1303, 64, %s1300, %s1289
        $region44: #{tpu_custom_call.1} parent=39 // pred_fallthru
          _
      $region40: #{tpu_custom_call.1} parent=5 // pred_fallthru
        _
      %p1306 = scmp.le.s32.totalorder 2, %s14
      // Predicated region
      $region45: #{tpu_custom_call.1} parent=5 // pred_check
        %p1307 = pneg %p1306
      $region46: #{tpu_custom_call.1} parent=5 // pred_check_branch
        %1309 = sbr.rel (%p1307) target = $region48
      $region47: #{tpu_custom_call.1} parent=5 // pred_region
        %s1310 = ssub.s32 %s14, 2
        // Predicated region
        $region49: #{tpu_custom_call.1} parent=47 // pred_check
          %p1311 = pneg %p153
        $region50: #{tpu_custom_call.1} parent=47 // pred_check_branch
          %1313 = sbr.rel (%p1311) target = $region52
        $region51: #{tpu_custom_call.1} parent=47 // pred_region
          %s1314 = sand.u32 %s138, 1
          %s1315 = scalar_lea.sflag [#allocation5], %s1314
          %s1316 = sand.u32 %s138, 1
          %s1317 = smul.addr %s1316, 4
          %s1318 = scalar_lea.vmem [#allocation4], %s1317
          %1319 = dma.done %s1315, 64
        $region52: #{tpu_custom_call.1} parent=47 // pred_fallthru
          _
      $region48: #{tpu_custom_call.1} parent=5 // pred_fallthru
        _
    $region6: #{tpu_custom_call.1} parent=1 // loop_footer
      %s18 = sadd.s32 1, %s14
    $region7: #{tpu_custom_call.1} parent=1 // loop_footer_branch
      %13 = sbr.rel target = $region3
    $region8: #{tpu_custom_call.1} parent=1 // loop_exit
      _
    %1320 = vsyncpa [#allocation5], 1
    %s1321 = scalar_lea.sflag [#allocation5], 1
    %1322 = vsyncpa %s1321, 1

</llo_original>
